<compile_context>
chip_gen: v5e
topology: v5e:2x2
jax: 0.10.0
libtpu: 0.0.40
codegen_flags: <defaults>
</compile_context>

<pallas_src>
import math
from functools import partial

import jax
import jax.numpy as jnp
from jax import lax
from jax.experimental import pallas as pl
from jax.experimental.pallas import tpu as pltpu


def _lstm_classifier_kernel(x_ref, wih_ref, whh_ref, b_ref, wout_ref, bout_ref,
                            out_ref, xproj_scr, h_scr, c_scr,
                            *, tb, hidden, seq_len, mask_tail, unroll):
    """One time-block of the LSTM (+ Linear + ReLU on the final block).

    x_ref:     (TB, B, D)     bf16 time-major input block
    wih_ref:   (D, 4H)        bf16 W_ih^T   (gate order i,f,o,g)
    whh_ref:   (H, 4H)        bf16 W_hh^T   (gate order i,f,o,g)
    b_ref:     (1, 4H)        f32  b_ih + b_hh (gate order i,f,o,g)
    wout_ref:  (H, E)         bf16 W_out^T
    bout_ref:  (1, E)         f32  b_out
    out_ref:   (B, E)         f32  written only on the last time-block
    xproj_scr: (TB*B, 4H)     f32  hoisted input projection for this block
    h_scr/c_scr: (B, H)       f32  recurrent state, persists across grid steps
    """
    t = pl.program_id(0)
    B = h_scr.shape[0]
    H = hidden
    D = x_ref.shape[2]

    @pl.when(t == 0)
    def _():
        h_scr[...] = jnp.zeros_like(h_scr)
        c_scr[...] = jnp.zeros_like(c_scr)

    # ---- hoisted, time-parallel input projection: one big MXU matmul --------
    x_flat = x_ref[...].reshape(tb * B, D)              # sublane-dims collapse
    xproj_scr[...] = jnp.dot(x_flat, wih_ref[...],
                             preferred_element_type=jnp.float32) + b_ref[...]

    # ---- serial recurrence: only h @ W_hh per step, h/c live in vregs -------
    def step(s, carry):
        h, c = carry
        base = pl.multiple_of(s * B, 8)                 # aligned per-step slice
        xg = xproj_scr[pl.ds(base, B), :]               # (B, 4H)
        gates = xg + jnp.dot(h.astype(jnp.bfloat16), whh_ref[...],
                             preferred_element_type=jnp.float32)
        # Gate layout (pre-permuted in wrapper): [i | f | o | g].
        # One sigmoid over (B, 3H) + one tanh over (B, H): 2 EUP launches.
        ifo = jax.nn.sigmoid(gates[:, :3 * H])
        g_g = jnp.tanh(gates[:, 3 * H:])
        i_g = ifo[:, 0 * H:1 * H]
        f_g = ifo[:, 1 * H:2 * H]
        o_g = ifo[:, 2 * H:3 * H]
        c_new = f_g * c + i_g * g_g
        h_new = o_g * jnp.tanh(c_new)
        if mask_tail:
            # Padded steps (global step >= T) keep the previous state.
            keep = (t * tb + s) < seq_len
            h_new = jnp.where(keep, h_new, h)
            c_new = jnp.where(keep, c_new, c)
        return h_new, c_new

    h, c = lax.fori_loop(0, tb, step, (h_scr[...], c_scr[...]), unroll=unroll)
    h_scr[...] = h
    c_scr[...] = c

    # ---- Linear + ReLU on the last hidden state (last time-block only) ------
    @pl.when(t == pl.num_programs(0) - 1)
    def _():
        y = jnp.dot(h.astype(wout_ref.dtype), wout_ref[...],
                    preferred_element_type=jnp.float32) + bout_ref[...]
        out_ref[...] = jnp.maximum(y, 0.0).astype(out_ref.dtype)


def _pick_time_block(T, max_tb=128):
    """Balanced block size: smallest count of blocks with tb <= max_tb."""
    n_blocks = pl.cdiv(T, max_tb)
    return pl.cdiv(T, n_blocks)


def _reorder_gates(w):
    """PyTorch gate order (i, f, g, o) along axis 0 -> (i, f, o, g)."""
    i, f, g, o = jnp.split(w, 4, axis=0)
    return jnp.concatenate([i, f, o, g], axis=0)


def classifier_lstm_forward(x, params, *, time_block=None):
    """x: (B, input_size, T) -- same convention as the PyTorch module input."""
    w_ih, w_hh, b_ih, b_hh, w_out, b_out = (
        params["w_ih"], params["w_hh"], params["b_ih"], params["b_hh"],
        params["w_out"], params["b_out"])

    B, D, T = x.shape
    H = w_hh.shape[1]
    E = w_out.shape[0]

    # Pad batch to the sublane height so every (B, .) tile is dense.
    Bp = max(8, ((B + 7) // 8) * 8)

    if time_block is None:
        time_block = _pick_time_block(T)
    time_block = min(time_block, T)
    n_blocks = pl.cdiv(T, time_block)
    Tp = n_blocks * time_block
    mask_tail = (Tp != T)

    # (B, D, T) -> time-major (T, B, D); bf16 sequence halves DMA bytes and
    # doubles MXU rate (accumulation stays f32).
    # TODO(synk): for long T, lay the sequence out time-major upstream to avoid
    # this wrapper-side transpose/pad materialization (a full extra HBM pass).
    x_tm = jnp.transpose(x, (2, 0, 1)).astype(jnp.bfloat16)
    if Bp != B or Tp != T:
        x_tm = jnp.pad(x_tm, ((0, Tp - T), (0, Bp - B), (0, 0)))

    # Pre-transposed, gate-permuted weights.  All MXU operands in bf16; the
    # per-step gate elementwise/EUP math stays f32 (h/c state stays f32).
    wih_t = jnp.transpose(_reorder_gates(w_ih)).astype(jnp.bfloat16)   # (D, 4H)
    whh_t = jnp.transpose(_reorder_gates(w_hh)).astype(jnp.bfloat16)   # (H, 4H)
    b = _reorder_gates((b_ih + b_hh).reshape(4 * H, 1))
    b = jnp.transpose(b).astype(jnp.float32)                           # (1, 4H)
    wout_t = jnp.transpose(w_out).astype(jnp.bfloat16)                 # (H, E)
    bout = b_out.reshape(1, E).astype(jnp.float32)                     # (1, E)

    kernel = partial(_lstm_classifier_kernel, tb=time_block, hidden=H,
                     seq_len=T, mask_tail=mask_tail,
                     unroll=min(8, time_block))

    # VMEM budget sized to actual usage (double-buffered streams + scratch),
    # with 2x headroom; clamped so it also fits v7x's smaller VMEM.
    est = (2 * time_block * Bp * D * 2                       # x stream (bf16, 2 bufs)
           + 2 * ((D + H) * 4 * H * 2 + H * E * 2            # weights (bf16, 2 bufs)
                  + 4 * H * 4 + E * 4)                       # biases (f32)
           + time_block * Bp * 4 * H * 4                     # xproj scratch (f32)
           + 2 * Bp * H * 4                                  # h/c state (f32)
           + 2 * Bp * E * 4)                                 # output (2 bufs)
    vmem_limit = int(min(64 * 1024 * 1024, max(8 * 1024 * 1024, 2 * est)))

    out = pl.pallas_call(
        kernel,
        out_shape=jax.ShapeDtypeStruct((Bp, E), jnp.float32),
        grid_spec=pltpu.PrefetchScalarGridSpec(
            num_scalar_prefetch=0,
            grid=(n_blocks,),
            in_specs=[
                pl.BlockSpec((time_block, Bp, D), lambda t: (t, 0, 0)),  # x stream
                pl.BlockSpec((D, 4 * H), lambda t: (0, 0)),              # W_ih^T
                pl.BlockSpec((H, 4 * H), lambda t: (0, 0)),              # W_hh^T
                pl.BlockSpec((1, 4 * H), lambda t: (0, 0)),              # bias
                pl.BlockSpec((H, E), lambda t: (0, 0)),                  # W_out^T
                pl.BlockSpec((1, E), lambda t: (0, 0)),                  # b_out
            ],
            out_specs=pl.BlockSpec((Bp, E), lambda t: (0, 0)),
            scratch_shapes=[
                pltpu.VMEM((time_block * Bp, 4 * H), jnp.float32),  # hoisted proj
                pltpu.VMEM((Bp, H), jnp.float32),                   # h state
                pltpu.VMEM((Bp, H), jnp.float32),                   # c state
            ],
        ),
        compiler_params=pltpu.CompilerParams(
            dimension_semantics=("arbitrary",),     # time recurrence is serial
            vmem_limit_bytes=vmem_limit,
        ),
    )(x_tm, wih_t, whh_t, b, wout_t, bout)

    return out[:B]


def init_params(key, input_size, lstm_size, embedding_size):
    """PyTorch-style uniform(-1/sqrt(H), 1/sqrt(H)) init."""
    ks = jax.random.split(key, 6)
    bound = 1.0 / math.sqrt(lstm_size)
    u = lambda k, shape: jax.random.uniform(k, shape, jnp.float32, -bound, bound)
    return {
        "w_ih": u(ks[0], (4 * lstm_size, input_size)),
        "w_hh": u(ks[1], (4 * lstm_size, lstm_size)),
        "b_ih": u(ks[2], (4 * lstm_size,)),
        "b_hh": u(ks[3], (4 * lstm_size,)),
        "w_out": u(ks[4], (embedding_size, lstm_size)),
        "b_out": u(ks[5], (embedding_size,)),
    }


def ref_forward(x, p):
    """Pure-JAX f32 reference matching the PyTorch module semantics."""
    B, D, T = x.shape
    H = p["w_hh"].shape[1]
    xs = jnp.transpose(x, (0, 2, 1))                    # (B, T, D)
    h = jnp.zeros((B, H), jnp.float32)
    c = jnp.zeros((B, H), jnp.float32)
    for t in range(T):
        g = xs[:, t, :] @ p["w_ih"].T + p["b_ih"] + h @ p["w_hh"].T + p["b_hh"]
        i = jax.nn.sigmoid(g[:, 0 * H:1 * H])
        f = jax.nn.sigmoid(g[:, 1 * H:2 * H])
        gg = jnp.tanh(g[:, 2 * H:3 * H])
        o = jax.nn.sigmoid(g[:, 3 * H:4 * H])
        c = f * c + i * gg
        h = o * jnp.tanh(c)
    return jnp.maximum(h @ p["w_out"].T + p["b_out"], 0.0)


if __name__ == "__main__":
    # Module defaults: input_size = lstm_size = embedding_size = 128 (lane
    # aligned).  Small demo: B=8 (one sublane tile), T=20 with time_block=8 so
    # the grid has 3 steps and the last block exercises the masked tail.
    B, INPUT_SIZE, T = 8, 128, 20
    LSTM_SIZE, EMBED_SIZE = 128, 128

    key = jax.random.PRNGKey(0)
    k_x, k_p = jax.random.split(key)
    x = jax.random.normal(k_x, (B, INPUT_SIZE, T), dtype=jnp.float32)
    params = init_params(k_p, INPUT_SIZE, LSTM_SIZE, EMBED_SIZE)

    out = classifier_lstm_forward(x, params, time_block=8)
    out = jax.block_until_ready(out)

    ref = ref_forward(x, params)
    assert out.shape == (B, EMBED_SIZE)
    # All MXU operands (x/W_ih, h/W_hh, W_out) are bf16 with f32 accumulation;
    # the rounding compounds through the 20-step serial recurrence, so compare
    # against the f32 reference with a correspondingly loose tolerance.
    err = float(jnp.max(jnp.abs(out - ref)))
    assert jnp.allclose(out, ref, atol=5e-2, rtol=5e-2), err
    print("KERNEL_OK")
</pallas_src>

<mosaic_0001>
module attributes {stable_mosaic.version = 11 : i64} {
  func.func @_lstm_classifier_kernel(%arg0: i32, %arg1: memref<8x8x128xbf16, #tpu.memory_space<vmem>>, %arg2: memref<128x512xbf16, #tpu.memory_space<vmem>>, %arg3: memref<128x512xbf16, #tpu.memory_space<vmem>>, %arg4: memref<1x512xf32, #tpu.memory_space<vmem>>, %arg5: memref<128x128xbf16, #tpu.memory_space<vmem>>, %arg6: memref<1x128xf32, #tpu.memory_space<vmem>>, %arg7: memref<8x128xf32, #tpu.memory_space<vmem>>, %arg8: memref<64x512xf32, #tpu.memory_space<vmem>>, %arg9: memref<8x128xf32, #tpu.memory_space<vmem>>, %arg10: memref<8x128xf32, #tpu.memory_space<vmem>>) attributes {dimension_semantics = [#tpu.dimension_semantics<arbitrary>], iteration_bounds = array<i64: 3>, scalar_prefetch = 0 : i64, scratch_operands = 3 : i64, tpu.core_type = #tpu.core_type<tc>, window_params = [{transform_indices = @transform_0, window_bounds = array<i64: 8, 8, 128>}, {pipeline_mode = #tpu.pipeline_mode<synchronous>, transform_indices = @transform_1, window_bounds = array<i64: 128, 512>}, {pipeline_mode = #tpu.pipeline_mode<synchronous>, transform_indices = @transform_2, window_bounds = array<i64: 128, 512>}, {pipeline_mode = #tpu.pipeline_mode<synchronous>, transform_indices = @transform_3, window_bounds = array<i64: 1, 512>}, {pipeline_mode = #tpu.pipeline_mode<synchronous>, transform_indices = @transform_4, window_bounds = array<i64: 128, 128>}, {pipeline_mode = #tpu.pipeline_mode<synchronous>, transform_indices = @transform_5, window_bounds = array<i64: 1, 128>}, {pipeline_mode = #tpu.pipeline_mode<synchronous>, transform_indices = @transform_6, window_bounds = array<i64: 8, 128>}]} {
    %c0_i32 = arith.constant 0 : i32
    %0 = arith.cmpi eq, %arg0, %c0_i32 : i32
    %1 = arith.extui %0 : i1 to i32
    %c0_i32_0 = arith.constant 0 : i32
    %2 = arith.cmpi ne, %1, %c0_i32_0 : i32
    scf.if %2 {
      %cst_83 = arith.constant 0.000000e+00 : f32
      %250 = vector.broadcast %cst_83 : f32 to vector<8x128xf32>
      %c0_84 = arith.constant 0 : index
      %c0_85 = arith.constant 0 : index
      %251 = vector.load %arg9[%c0_84, %c0_85] : memref<8x128xf32, #tpu.memory_space<vmem>>, vector<8x128xf32>
      tpu.vector_store %arg9[%c0_84, %c0_85], %250 {strides = array<i32>} : memref<8x128xf32, #tpu.memory_space<vmem>>, vector<8x128xf32>,
      %cst_86 = arith.constant 0.000000e+00 : f32
      %252 = vector.broadcast %cst_86 : f32 to vector<8x128xf32>
      %c0_87 = arith.constant 0 : index
      %c0_88 = arith.constant 0 : index
      %253 = vector.load %arg10[%c0_87, %c0_88] : memref<8x128xf32, #tpu.memory_space<vmem>>, vector<8x128xf32>
      tpu.vector_store %arg10[%c0_87, %c0_88], %252 {strides = array<i32>} : memref<8x128xf32, #tpu.memory_space<vmem>>, vector<8x128xf32>,
    } else {
    }
    %c0 = arith.constant 0 : index
    %c0_1 = arith.constant 0 : index
    %c0_2 = arith.constant 0 : index
    %3 = vector.load %arg1[%c0, %c0_1, %c0_2] : memref<8x8x128xbf16, #tpu.memory_space<vmem>>, vector<8x8x128xbf16>
    %4 = vector.shape_cast %3 : vector<8x8x128xbf16> to vector<64x128xbf16>
    %c0_3 = arith.constant 0 : index
    %c0_4 = arith.constant 0 : index
    %5 = vector.load %arg2[%c0_3, %c0_4] : memref<128x512xbf16, #tpu.memory_space<vmem>>, vector<128x512xbf16>
    %cst = arith.constant dense<0.000000e+00> : vector<64x512xf32>
    %6 = tpu.matmul %4, %5, %cst {dimension_numbers = #tpu.dot_dimension_numbers<[1], [0], [0], [1], [0, 0, 1, 1], [], []>} : vector<64x128xbf16>, vector<128x512xbf16>, vector<64x512xf32> -> vector<64x512xf32>
    %c0_5 = arith.constant 0 : index
    %c0_6 = arith.constant 0 : index
    %7 = vector.load %arg4[%c0_5, %c0_6] : memref<1x512xf32, #tpu.memory_space<vmem>>, vector<1x512xf32>
    %8 = vector.broadcast %7 : vector<1x512xf32> to vector<64x512xf32>
    %9 = arith.addf %6, %8 : vector<64x512xf32>
    %c0_7 = arith.constant 0 : index
    %c0_8 = arith.constant 0 : index
    %10 = vector.load %arg8[%c0_7, %c0_8] : memref<64x512xf32, #tpu.memory_space<vmem>>, vector<64x512xf32>
    tpu.vector_store %arg8[%c0_7, %c0_8], %9 {strides = array<i32>} : memref<64x512xf32, #tpu.memory_space<vmem>>, vector<64x512xf32>,
    %c0_9 = arith.constant 0 : index
    %c0_10 = arith.constant 0 : index
    %11 = vector.load %arg9[%c0_9, %c0_10] : memref<8x128xf32, #tpu.memory_space<vmem>>, vector<8x128xf32>
    %c0_11 = arith.constant 0 : index
    %c0_12 = arith.constant 0 : index
    %12 = vector.load %arg10[%c0_11, %c0_12] : memref<8x128xf32, #tpu.memory_space<vmem>>, vector<8x128xf32>
    %c0_i32_13 = arith.constant 0 : i32
    %c8_i32 = arith.constant 8 : i32
    %13 = arith.muli %c0_i32_13, %c8_i32 : i32
    %14 = tpu.assume_multiple %13, 8 : i32
    %15 = arith.index_cast %14 : i32 to index
    %c0_14 = arith.constant 0 : index
    %16 = vector.load %arg8[%15, %c0_14] : memref<64x512xf32, #tpu.memory_space<vmem>>, vector<8x512xf32>
    %17 = arith.truncf %11 : vector<8x128xf32> to vector<8x128xbf16>
    %c0_15 = arith.constant 0 : index
    %c0_16 = arith.constant 0 : index
    %18 = vector.load %arg3[%c0_15, %c0_16] : memref<128x512xbf16, #tpu.memory_space<vmem>>, vector<128x512xbf16>
    %cst_17 = arith.constant dense<0.000000e+00> : vector<8x512xf32>
    %19 = tpu.matmul %17, %18, %cst_17 {dimension_numbers = #tpu.dot_dimension_numbers<[1], [0], [0], [1], [0, 0, 1, 1], [], []>} : vector<8x128xbf16>, vector<128x512xbf16>, vector<8x512xf32> -> vector<8x512xf32>
    %20 = arith.addf %16, %19 : vector<8x512xf32>
    %21 = vector.extract_strided_slice %20 {offsets = [0, 0], sizes = [8, 384], strides = [1, 1]} : vector<8x512xf32> to vector<8x384xf32>
    %22 = arith.negf %21 : vector<8x384xf32>
    %23 = math.exp %22 : vector<8x384xf32>
    %cst_18 = arith.constant 1.000000e+00 : f32
    %24 = vector.broadcast %cst_18 : f32 to vector<8x384xf32>
    %25 = arith.addf %24, %23 : vector<8x384xf32>
    %26 = arith.divf %24, %25 : vector<8x384xf32>
    %27 = vector.extract_strided_slice %20 {offsets = [0, 384], sizes = [8, 128], strides = [1, 1]} : vector<8x512xf32> to vector<8x128xf32>
    %28 = math.tanh %27 : vector<8x128xf32>
    %29 = vector.extract_strided_slice %26 {offsets = [0, 0], sizes = [8, 128], strides = [1, 1]} : vector<8x384xf32> to vector<8x128xf32>
    %30 = vector.extract_strided_slice %26 {offsets = [0, 128], sizes = [8, 128], strides = [1, 1]} : vector<8x384xf32> to vector<8x128xf32>
    %31 = vector.extract_strided_slice %26 {offsets = [0, 256], sizes = [8, 128], strides = [1, 1]} : vector<8x384xf32> to vector<8x128xf32>
    %32 = arith.mulf %30, %12 : vector<8x128xf32>
    %33 = arith.mulf %29, %28 : vector<8x128xf32>
    %34 = arith.addf %32, %33 : vector<8x128xf32>
    %35 = math.tanh %34 : vector<8x128xf32>
    %36 = arith.mulf %31, %35 : vector<8x128xf32>
    %c8_i32_19 = arith.constant 8 : i32
    %37 = arith.muli %arg0, %c8_i32_19 : i32
    %38 = arith.addi %37, %c0_i32_13 : i32
    %c20_i32 = arith.constant 20 : i32
    %39 = arith.cmpi slt, %38, %c20_i32 : i32
    %40 = arith.select %39, %36, %11 : vector<8x128xf32>
    %41 = arith.select %39, %34, %12 : vector<8x128xf32>
    %c1_i32 = arith.constant 1 : i32
    %c8_i32_20 = arith.constant 8 : i32
    %42 = arith.muli %c1_i32, %c8_i32_20 : i32
    %43 = tpu.assume_multiple %42, 8 : i32
    %44 = arith.index_cast %43 : i32 to index
    %c0_21 = arith.constant 0 : index
    %45 = vector.load %arg8[%44, %c0_21] : memref<64x512xf32, #tpu.memory_space<vmem>>, vector<8x512xf32>
    %46 = arith.truncf %40 : vector<8x128xf32> to vector<8x128xbf16>
    %c0_22 = arith.constant 0 : index
    %c0_23 = arith.constant 0 : index
    %47 = vector.load %arg3[%c0_22, %c0_23] : memref<128x512xbf16, #tpu.memory_space<vmem>>, vector<128x512xbf16>
    %cst_24 = arith.constant dense<0.000000e+00> : vector<8x512xf32>
    %48 = tpu.matmul %46, %47, %cst_24 {dimension_numbers = #tpu.dot_dimension_numbers<[1], [0], [0], [1], [0, 0, 1, 1], [], []>} : vector<8x128xbf16>, vector<128x512xbf16>, vector<8x512xf32> -> vector<8x512xf32>
    %49 = arith.addf %45, %48 : vector<8x512xf32>
    %50 = vector.extract_strided_slice %49 {offsets = [0, 0], sizes = [8, 384], strides = [1, 1]} : vector<8x512xf32> to vector<8x384xf32>
    %51 = arith.negf %50 : vector<8x384xf32>
    %52 = math.exp %51 : vector<8x384xf32>
    %cst_25 = arith.constant 1.000000e+00 : f32
    %53 = vector.broadcast %cst_25 : f32 to vector<8x384xf32>
    %54 = arith.addf %53, %52 : vector<8x384xf32>
    %55 = arith.divf %53, %54 : vector<8x384xf32>
    %56 = vector.extract_strided_slice %49 {offsets = [0, 384], sizes = [8, 128], strides = [1, 1]} : vector<8x512xf32> to vector<8x128xf32>
    %57 = math.tanh %56 : vector<8x128xf32>
    %58 = vector.extract_strided_slice %55 {offsets = [0, 0], sizes = [8, 128], strides = [1, 1]} : vector<8x384xf32> to vector<8x128xf32>
    %59 = vector.extract_strided_slice %55 {offsets = [0, 128], sizes = [8, 128], strides = [1, 1]} : vector<8x384xf32> to vector<8x128xf32>
    %60 = vector.extract_strided_slice %55 {offsets = [0, 256], sizes = [8, 128], strides = [1, 1]} : vector<8x384xf32> to vector<8x128xf32>
    %61 = arith.mulf %59, %41 : vector<8x128xf32>
    %62 = arith.mulf %58, %57 : vector<8x128xf32>
    %63 = arith.addf %61, %62 : vector<8x128xf32>
    %64 = math.tanh %63 : vector<8x128xf32>
    %65 = arith.mulf %60, %64 : vector<8x128xf32>
    %c8_i32_26 = arith.constant 8 : i32
    %66 = arith.muli %arg0, %c8_i32_26 : i32
    %67 = arith.addi %66, %c1_i32 : i32
    %c20_i32_27 = arith.constant 20 : i32
    %68 = arith.cmpi slt, %67, %c20_i32_27 : i32
    %69 = arith.select %68, %65, %40 : vector<8x128xf32>
    %70 = arith.select %68, %63, %41 : vector<8x128xf32>
    %c2_i32 = arith.constant 2 : i32
    %c8_i32_28 = arith.constant 8 : i32
    %71 = arith.muli %c2_i32, %c8_i32_28 : i32
    %72 = tpu.assume_multiple %71, 8 : i32
    %73 = arith.index_cast %72 : i32 to index
    %c0_29 = arith.constant 0 : index
    %74 = vector.load %arg8[%73, %c0_29] : memref<64x512xf32, #tpu.memory_space<vmem>>, vector<8x512xf32>
    %75 = arith.truncf %69 : vector<8x128xf32> to vector<8x128xbf16>
    %c0_30 = arith.constant 0 : index
    %c0_31 = arith.constant 0 : index
    %76 = vector.load %arg3[%c0_30, %c0_31] : memref<128x512xbf16, #tpu.memory_space<vmem>>, vector<128x512xbf16>
    %cst_32 = arith.constant dense<0.000000e+00> : vector<8x512xf32>
    %77 = tpu.matmul %75, %76, %cst_32 {dimension_numbers = #tpu.dot_dimension_numbers<[1], [0], [0], [1], [0, 0, 1, 1], [], []>} : vector<8x128xbf16>, vector<128x512xbf16>, vector<8x512xf32> -> vector<8x512xf32>
    %78 = arith.addf %74, %77 : vector<8x512xf32>
    %79 = vector.extract_strided_slice %78 {offsets = [0, 0], sizes = [8, 384], strides = [1, 1]} : vector<8x512xf32> to vector<8x384xf32>
    %80 = arith.negf %79 : vector<8x384xf32>
    %81 = math.exp %80 : vector<8x384xf32>
    %cst_33 = arith.constant 1.000000e+00 : f32
    %82 = vector.broadcast %cst_33 : f32 to vector<8x384xf32>
    %83 = arith.addf %82, %81 : vector<8x384xf32>
    %84 = arith.divf %82, %83 : vector<8x384xf32>
    %85 = vector.extract_strided_slice %78 {offsets = [0, 384], sizes = [8, 128], strides = [1, 1]} : vector<8x512xf32> to vector<8x128xf32>
    %86 = math.tanh %85 : vector<8x128xf32>
    %87 = vector.extract_strided_slice %84 {offsets = [0, 0], sizes = [8, 128], strides = [1, 1]} : vector<8x384xf32> to vector<8x128xf32>
    %88 = vector.extract_strided_slice %84 {offsets = [0, 128], sizes = [8, 128], strides = [1, 1]} : vector<8x384xf32> to vector<8x128xf32>
    %89 = vector.extract_strided_slice %84 {offsets = [0, 256], sizes = [8, 128], strides = [1, 1]} : vector<8x384xf32> to vector<8x128xf32>
    %90 = arith.mulf %88, %70 : vector<8x128xf32>
    %91 = arith.mulf %87, %86 : vector<8x128xf32>
    %92 = arith.addf %90, %91 : vector<8x128xf32>
    %93 = math.tanh %92 : vector<8x128xf32>
    %94 = arith.mulf %89, %93 : vector<8x128xf32>
    %c8_i32_34 = arith.constant 8 : i32
    %95 = arith.muli %arg0, %c8_i32_34 : i32
    %96 = arith.addi %95, %c2_i32 : i32
    %c20_i32_35 = arith.constant 20 : i32
    %97 = arith.cmpi slt, %96, %c20_i32_35 : i32
    %98 = arith.select %97, %94, %69 : vector<8x128xf32>
    %99 = arith.select %97, %92, %70 : vector<8x128xf32>
    %c3_i32 = arith.constant 3 : i32
    %c8_i32_36 = arith.constant 8 : i32
    %100 = arith.muli %c3_i32, %c8_i32_36 : i32
    %101 = tpu.assume_multiple %100, 8 : i32
    %102 = arith.index_cast %101 : i32 to index
    %c0_37 = arith.constant 0 : index
    %103 = vector.load %arg8[%102, %c0_37] : memref<64x512xf32, #tpu.memory_space<vmem>>, vector<8x512xf32>
    %104 = arith.truncf %98 : vector<8x128xf32> to vector<8x128xbf16>
    %c0_38 = arith.constant 0 : index
    %c0_39 = arith.constant 0 : index
    %105 = vector.load %arg3[%c0_38, %c0_39] : memref<128x512xbf16, #tpu.memory_space<vmem>>, vector<128x512xbf16>
    %cst_40 = arith.constant dense<0.000000e+00> : vector<8x512xf32>
    %106 = tpu.matmul %104, %105, %cst_40 {dimension_numbers = #tpu.dot_dimension_numbers<[1], [0], [0], [1], [0, 0, 1, 1], [], []>} : vector<8x128xbf16>, vector<128x512xbf16>, vector<8x512xf32> -> vector<8x512xf32>
    %107 = arith.addf %103, %106 : vector<8x512xf32>
    %108 = vector.extract_strided_slice %107 {offsets = [0, 0], sizes = [8, 384], strides = [1, 1]} : vector<8x512xf32> to vector<8x384xf32>
    %109 = arith.negf %108 : vector<8x384xf32>
    %110 = math.exp %109 : vector<8x384xf32>
    %cst_41 = arith.constant 1.000000e+00 : f32
    %111 = vector.broadcast %cst_41 : f32 to vector<8x384xf32>
    %112 = arith.addf %111, %110 : vector<8x384xf32>
    %113 = arith.divf %111, %112 : vector<8x384xf32>
    %114 = vector.extract_strided_slice %107 {offsets = [0, 384], sizes = [8, 128], strides = [1, 1]} : vector<8x512xf32> to vector<8x128xf32>
    %115 = math.tanh %114 : vector<8x128xf32>
    %116 = vector.extract_strided_slice %113 {offsets = [0, 0], sizes = [8, 128], strides = [1, 1]} : vector<8x384xf32> to vector<8x128xf32>
    %117 = vector.extract_strided_slice %113 {offsets = [0, 128], sizes = [8, 128], strides = [1, 1]} : vector<8x384xf32> to vector<8x128xf32>
    %118 = vector.extract_strided_slice %113 {offsets = [0, 256], sizes = [8, 128], strides = [1, 1]} : vector<8x384xf32> to vector<8x128xf32>
    %119 = arith.mulf %117, %99 : vector<8x128xf32>
    %120 = arith.mulf %116, %115 : vector<8x128xf32>
    %121 = arith.addf %119, %120 : vector<8x128xf32>
    %122 = math.tanh %121 : vector<8x128xf32>
    %123 = arith.mulf %118, %122 : vector<8x128xf32>
    %c8_i32_42 = arith.constant 8 : i32
    %124 = arith.muli %arg0, %c8_i32_42 : i32
    %125 = arith.addi %124, %c3_i32 : i32
    %c20_i32_43 = arith.constant 20 : i32
    %126 = arith.cmpi slt, %125, %c20_i32_43 : i32
    %127 = arith.select %126, %123, %98 : vector<8x128xf32>
    %128 = arith.select %126, %121, %99 : vector<8x128xf32>
    %c4_i32 = arith.constant 4 : i32
    %c8_i32_44 = arith.constant 8 : i32
    %129 = arith.muli %c4_i32, %c8_i32_44 : i32
    %130 = tpu.assume_multiple %129, 8 : i32
    %131 = arith.index_cast %130 : i32 to index
    %c0_45 = arith.constant 0 : index
    %132 = vector.load %arg8[%131, %c0_45] : memref<64x512xf32, #tpu.memory_space<vmem>>, vector<8x512xf32>
    %133 = arith.truncf %127 : vector<8x128xf32> to vector<8x128xbf16>
    %c0_46 = arith.constant 0 : index
    %c0_47 = arith.constant 0 : index
    %134 = vector.load %arg3[%c0_46, %c0_47] : memref<128x512xbf16, #tpu.memory_space<vmem>>, vector<128x512xbf16>
    %cst_48 = arith.constant dense<0.000000e+00> : vector<8x512xf32>
    %135 = tpu.matmul %133, %134, %cst_48 {dimension_numbers = #tpu.dot_dimension_numbers<[1], [0], [0], [1], [0, 0, 1, 1], [], []>} : vector<8x128xbf16>, vector<128x512xbf16>, vector<8x512xf32> -> vector<8x512xf32>
    %136 = arith.addf %132, %135 : vector<8x512xf32>
    %137 = vector.extract_strided_slice %136 {offsets = [0, 0], sizes = [8, 384], strides = [1, 1]} : vector<8x512xf32> to vector<8x384xf32>
    %138 = arith.negf %137 : vector<8x384xf32>
    %139 = math.exp %138 : vector<8x384xf32>
    %cst_49 = arith.constant 1.000000e+00 : f32
    %140 = vector.broadcast %cst_49 : f32 to vector<8x384xf32>
    %141 = arith.addf %140, %139 : vector<8x384xf32>
    %142 = arith.divf %140, %141 : vector<8x384xf32>
    %143 = vector.extract_strided_slice %136 {offsets = [0, 384], sizes = [8, 128], strides = [1, 1]} : vector<8x512xf32> to vector<8x128xf32>
    %144 = math.tanh %143 : vector<8x128xf32>
    %145 = vector.extract_strided_slice %142 {offsets = [0, 0], sizes = [8, 128], strides = [1, 1]} : vector<8x384xf32> to vector<8x128xf32>
    %146 = vector.extract_strided_slice %142 {offsets = [0, 128], sizes = [8, 128], strides = [1, 1]} : vector<8x384xf32> to vector<8x128xf32>
    %147 = vector.extract_strided_slice %142 {offsets = [0, 256], sizes = [8, 128], strides = [1, 1]} : vector<8x384xf32> to vector<8x128xf32>
    %148 = arith.mulf %146, %128 : vector<8x128xf32>
    %149 = arith.mulf %145, %144 : vector<8x128xf32>
    %150 = arith.addf %148, %149 : vector<8x128xf32>
    %151 = math.tanh %150 : vector<8x128xf32>
    %152 = arith.mulf %147, %151 : vector<8x128xf32>
    %c8_i32_50 = arith.constant 8 : i32
    %153 = arith.muli %arg0, %c8_i32_50 : i32
    %154 = arith.addi %153, %c4_i32 : i32
    %c20_i32_51 = arith.constant 20 : i32
    %155 = arith.cmpi slt, %154, %c20_i32_51 : i32
    %156 = arith.select %155, %152, %127 : vector<8x128xf32>
    %157 = arith.select %155, %150, %128 : vector<8x128xf32>
    %c5_i32 = arith.constant 5 : i32
    %c8_i32_52 = arith.constant 8 : i32
    %158 = arith.muli %c5_i32, %c8_i32_52 : i32
    %159 = tpu.assume_multiple %158, 8 : i32
    %160 = arith.index_cast %159 : i32 to index
    %c0_53 = arith.constant 0 : index
    %161 = vector.load %arg8[%160, %c0_53] : memref<64x512xf32, #tpu.memory_space<vmem>>, vector<8x512xf32>
    %162 = arith.truncf %156 : vector<8x128xf32> to vector<8x128xbf16>
    %c0_54 = arith.constant 0 : index
    %c0_55 = arith.constant 0 : index
    %163 = vector.load %arg3[%c0_54, %c0_55] : memref<128x512xbf16, #tpu.memory_space<vmem>>, vector<128x512xbf16>
    %cst_56 = arith.constant dense<0.000000e+00> : vector<8x512xf32>
    %164 = tpu.matmul %162, %163, %cst_56 {dimension_numbers = #tpu.dot_dimension_numbers<[1], [0], [0], [1], [0, 0, 1, 1], [], []>} : vector<8x128xbf16>, vector<128x512xbf16>, vector<8x512xf32> -> vector<8x512xf32>
    %165 = arith.addf %161, %164 : vector<8x512xf32>
    %166 = vector.extract_strided_slice %165 {offsets = [0, 0], sizes = [8, 384], strides = [1, 1]} : vector<8x512xf32> to vector<8x384xf32>
    %167 = arith.negf %166 : vector<8x384xf32>
    %168 = math.exp %167 : vector<8x384xf32>
    %cst_57 = arith.constant 1.000000e+00 : f32
    %169 = vector.broadcast %cst_57 : f32 to vector<8x384xf32>
    %170 = arith.addf %169, %168 : vector<8x384xf32>
    %171 = arith.divf %169, %170 : vector<8x384xf32>
    %172 = vector.extract_strided_slice %165 {offsets = [0, 384], sizes = [8, 128], strides = [1, 1]} : vector<8x512xf32> to vector<8x128xf32>
    %173 = math.tanh %172 : vector<8x128xf32>
    %174 = vector.extract_strided_slice %171 {offsets = [0, 0], sizes = [8, 128], strides = [1, 1]} : vector<8x384xf32> to vector<8x128xf32>
    %175 = vector.extract_strided_slice %171 {offsets = [0, 128], sizes = [8, 128], strides = [1, 1]} : vector<8x384xf32> to vector<8x128xf32>
    %176 = vector.extract_strided_slice %171 {offsets = [0, 256], sizes = [8, 128], strides = [1, 1]} : vector<8x384xf32> to vector<8x128xf32>
    %177 = arith.mulf %175, %157 : vector<8x128xf32>
    %178 = arith.mulf %174, %173 : vector<8x128xf32>
    %179 = arith.addf %177, %178 : vector<8x128xf32>
    %180 = math.tanh %179 : vector<8x128xf32>
    %181 = arith.mulf %176, %180 : vector<8x128xf32>
    %c8_i32_58 = arith.constant 8 : i32
    %182 = arith.muli %arg0, %c8_i32_58 : i32
    %183 = arith.addi %182, %c5_i32 : i32
    %c20_i32_59 = arith.constant 20 : i32
    %184 = arith.cmpi slt, %183, %c20_i32_59 : i32
    %185 = arith.select %184, %181, %156 : vector<8x128xf32>
    %186 = arith.select %184, %179, %157 : vector<8x128xf32>
    %c6_i32 = arith.constant 6 : i32
    %c8_i32_60 = arith.constant 8 : i32
    %187 = arith.muli %c6_i32, %c8_i32_60 : i32
    %188 = tpu.assume_multiple %187, 8 : i32
    %189 = arith.index_cast %188 : i32 to index
    %c0_61 = arith.constant 0 : index
    %190 = vector.load %arg8[%189, %c0_61] : memref<64x512xf32, #tpu.memory_space<vmem>>, vector<8x512xf32>
    %191 = arith.truncf %185 : vector<8x128xf32> to vector<8x128xbf16>
    %c0_62 = arith.constant 0 : index
    %c0_63 = arith.constant 0 : index
    %192 = vector.load %arg3[%c0_62, %c0_63] : memref<128x512xbf16, #tpu.memory_space<vmem>>, vector<128x512xbf16>
    %cst_64 = arith.constant dense<0.000000e+00> : vector<8x512xf32>
    %193 = tpu.matmul %191, %192, %cst_64 {dimension_numbers = #tpu.dot_dimension_numbers<[1], [0], [0], [1], [0, 0, 1, 1], [], []>} : vector<8x128xbf16>, vector<128x512xbf16>, vector<8x512xf32> -> vector<8x512xf32>
    %194 = arith.addf %190, %193 : vector<8x512xf32>
    %195 = vector.extract_strided_slice %194 {offsets = [0, 0], sizes = [8, 384], strides = [1, 1]} : vector<8x512xf32> to vector<8x384xf32>
    %196 = arith.negf %195 : vector<8x384xf32>
    %197 = math.exp %196 : vector<8x384xf32>
    %cst_65 = arith.constant 1.000000e+00 : f32
    %198 = vector.broadcast %cst_65 : f32 to vector<8x384xf32>
    %199 = arith.addf %198, %197 : vector<8x384xf32>
    %200 = arith.divf %198, %199 : vector<8x384xf32>
    %201 = vector.extract_strided_slice %194 {offsets = [0, 384], sizes = [8, 128], strides = [1, 1]} : vector<8x512xf32> to vector<8x128xf32>
    %202 = math.tanh %201 : vector<8x128xf32>
    %203 = vector.extract_strided_slice %200 {offsets = [0, 0], sizes = [8, 128], strides = [1, 1]} : vector<8x384xf32> to vector<8x128xf32>
    %204 = vector.extract_strided_slice %200 {offsets = [0, 128], sizes = [8, 128], strides = [1, 1]} : vector<8x384xf32> to vector<8x128xf32>
    %205 = vector.extract_strided_slice %200 {offsets = [0, 256], sizes = [8, 128], strides = [1, 1]} : vector<8x384xf32> to vector<8x128xf32>
    %206 = arith.mulf %204, %186 : vector<8x128xf32>
    %207 = arith.mulf %203, %202 : vector<8x128xf32>
    %208 = arith.addf %206, %207 : vector<8x128xf32>
    %209 = math.tanh %208 : vector<8x128xf32>
    %210 = arith.mulf %205, %209 : vector<8x128xf32>
    %c8_i32_66 = arith.constant 8 : i32
    %211 = arith.muli %arg0, %c8_i32_66 : i32
    %212 = arith.addi %211, %c6_i32 : i32
    %c20_i32_67 = arith.constant 20 : i32
    %213 = arith.cmpi slt, %212, %c20_i32_67 : i32
    %214 = arith.select %213, %210, %185 : vector<8x128xf32>
    %215 = arith.select %213, %208, %186 : vector<8x128xf32>
    %c7_i32 = arith.constant 7 : i32
    %c8_i32_68 = arith.constant 8 : i32
    %216 = arith.muli %c7_i32, %c8_i32_68 : i32
    %217 = tpu.assume_multiple %216, 8 : i32
    %218 = arith.index_cast %217 : i32 to index
    %c0_69 = arith.constant 0 : index
    %219 = vector.load %arg8[%218, %c0_69] : memref<64x512xf32, #tpu.memory_space<vmem>>, vector<8x512xf32>
    %220 = arith.truncf %214 : vector<8x128xf32> to vector<8x128xbf16>
    %c0_70 = arith.constant 0 : index
    %c0_71 = arith.constant 0 : index
    %221 = vector.load %arg3[%c0_70, %c0_71] : memref<128x512xbf16, #tpu.memory_space<vmem>>, vector<128x512xbf16>
    %cst_72 = arith.constant dense<0.000000e+00> : vector<8x512xf32>
    %222 = tpu.matmul %220, %221, %cst_72 {dimension_numbers = #tpu.dot_dimension_numbers<[1], [0], [0], [1], [0, 0, 1, 1], [], []>} : vector<8x128xbf16>, vector<128x512xbf16>, vector<8x512xf32> -> vector<8x512xf32>
    %223 = arith.addf %219, %222 : vector<8x512xf32>
    %224 = vector.extract_strided_slice %223 {offsets = [0, 0], sizes = [8, 384], strides = [1, 1]} : vector<8x512xf32> to vector<8x384xf32>
    %225 = arith.negf %224 : vector<8x384xf32>
    %226 = math.exp %225 : vector<8x384xf32>
    %cst_73 = arith.constant 1.000000e+00 : f32
    %227 = vector.broadcast %cst_73 : f32 to vector<8x384xf32>
    %228 = arith.addf %227, %226 : vector<8x384xf32>
    %229 = arith.divf %227, %228 : vector<8x384xf32>
    %230 = vector.extract_strided_slice %223 {offsets = [0, 384], sizes = [8, 128], strides = [1, 1]} : vector<8x512xf32> to vector<8x128xf32>
    %231 = math.tanh %230 : vector<8x128xf32>
    %232 = vector.extract_strided_slice %229 {offsets = [0, 0], sizes = [8, 128], strides = [1, 1]} : vector<8x384xf32> to vector<8x128xf32>
    %233 = vector.extract_strided_slice %229 {offsets = [0, 128], sizes = [8, 128], strides = [1, 1]} : vector<8x384xf32> to vector<8x128xf32>
    %234 = vector.extract_strided_slice %229 {offsets = [0, 256], sizes = [8, 128], strides = [1, 1]} : vector<8x384xf32> to vector<8x128xf32>
    %235 = arith.mulf %233, %215 : vector<8x128xf32>
    %236 = arith.mulf %232, %231 : vector<8x128xf32>
    %237 = arith.addf %235, %236 : vector<8x128xf32>
    %238 = math.tanh %237 : vector<8x128xf32>
    %239 = arith.mulf %234, %238 : vector<8x128xf32>
    %c8_i32_74 = arith.constant 8 : i32
    %240 = arith.muli %arg0, %c8_i32_74 : i32
    %241 = arith.addi %240, %c7_i32 : i32
    %c20_i32_75 = arith.constant 20 : i32
    %242 = arith.cmpi slt, %241, %c20_i32_75 : i32
    %243 = arith.select %242, %239, %214 : vector<8x128xf32>
    %244 = arith.select %242, %237, %215 : vector<8x128xf32>
    %c8_i32_76 = arith.constant 8 : i32
    %c0_77 = arith.constant 0 : index
    %c0_78 = arith.constant 0 : index
    %245 = vector.load %arg9[%c0_77, %c0_78] : memref<8x128xf32, #tpu.memory_space<vmem>>, vector<8x128xf32>
    tpu.vector_store %arg9[%c0_77, %c0_78], %243 {strides = array<i32>} : memref<8x128xf32, #tpu.memory_space<vmem>>, vector<8x128xf32>,
    %c0_79 = arith.constant 0 : index
    %c0_80 = arith.constant 0 : index
    %246 = vector.load %arg10[%c0_79, %c0_80] : memref<8x128xf32, #tpu.memory_space<vmem>>, vector<8x128xf32>
    tpu.vector_store %arg10[%c0_79, %c0_80], %244 {strides = array<i32>} : memref<8x128xf32, #tpu.memory_space<vmem>>, vector<8x128xf32>,
    %c2_i32_81 = arith.constant 2 : i32
    %247 = arith.cmpi eq, %arg0, %c2_i32_81 : i32
    %248 = arith.extui %247 : i1 to i32
    %c0_i32_82 = arith.constant 0 : i32
    %249 = arith.cmpi ne, %248, %c0_i32_82 : i32
    scf.if %249 {
      %250 = arith.truncf %243 : vector<8x128xf32> to vector<8x128xbf16>
      %c0_83 = arith.constant 0 : index
      %c0_84 = arith.constant 0 : index
      %251 = vector.load %arg5[%c0_83, %c0_84] : memref<128x128xbf16, #tpu.memory_space<vmem>>, vector<128x128xbf16>
      %cst_85 = arith.constant dense<0.000000e+00> : vector<8x128xf32>
      %252 = tpu.matmul %250, %251, %cst_85 {dimension_numbers = #tpu.dot_dimension_numbers<[1], [0], [0], [1], [0, 0, 1, 1], [], []>} : vector<8x128xbf16>, vector<128x128xbf16>, vector<8x128xf32> -> vector<8x128xf32>
      %c0_86 = arith.constant 0 : index
      %c0_87 = arith.constant 0 : index
      %253 = vector.load %arg6[%c0_86, %c0_87] : memref<1x128xf32, #tpu.memory_space<vmem>>, vector<1x128xf32>
      %254 = vector.broadcast %253 : vector<1x128xf32> to vector<8x128xf32>
      %255 = arith.addf %252, %254 : vector<8x128xf32>
      %cst_88 = arith.constant 0.000000e+00 : f32
      %256 = vector.broadcast %cst_88 : f32 to vector<8x128xf32>
      %257 = arith.maximumf %255, %256 : vector<8x128xf32>
      %c0_89 = arith.constant 0 : index
      %c0_90 = arith.constant 0 : index
      %258 = vector.load %arg7[%c0_89, %c0_90] : memref<8x128xf32, #tpu.memory_space<vmem>>, vector<8x128xf32>
      tpu.vector_store %arg7[%c0_89, %c0_90], %257 {strides = array<i32>} : memref<8x128xf32, #tpu.memory_space<vmem>>, vector<8x128xf32>,
    } else {
    }
    return
  }
  func.func @transform_0(%arg0: i32) -> (i32, i32, i32) {
    %c0_i32 = arith.constant 0 : i32
    %c0_i32_0 = arith.constant 0 : i32
    %c0_i32_1 = arith.constant 0 : i32
    return %arg0, %c0_i32, %c0_i32_0 : i32, i32, i32
  }
  func.func @transform_1(%arg0: i32) -> (i32, i32) {
    %c0_i32 = arith.constant 0 : i32
    %c0_i32_0 = arith.constant 0 : i32
    %c0_i32_1 = arith.constant 0 : i32
    return %c0_i32, %c0_i32_0 : i32, i32
  }
  func.func @transform_2(%arg0: i32) -> (i32, i32) {
    %c0_i32 = arith.constant 0 : i32
    %c0_i32_0 = arith.constant 0 : i32
    %c0_i32_1 = arith.constant 0 : i32
    return %c0_i32, %c0_i32_0 : i32, i32
  }
  func.func @transform_3(%arg0: i32) -> (i32, i32) {
    %c0_i32 = arith.constant 0 : i32
    %c0_i32_0 = arith.constant 0 : i32
    %c0_i32_1 = arith.constant 0 : i32
    return %c0_i32, %c0_i32_0 : i32, i32
  }
  func.func @transform_4(%arg0: i32) -> (i32, i32) {
    %c0_i32 = arith.constant 0 : i32
    %c0_i32_0 = arith.constant 0 : i32
    %c0_i32_1 = arith.constant 0 : i32
    return %c0_i32, %c0_i32_0 : i32, i32
  }
  func.func @transform_5(%arg0: i32) -> (i32, i32) {
    %c0_i32 = arith.constant 0 : i32
    %c0_i32_0 = arith.constant 0 : i32
    %c0_i32_1 = arith.constant 0 : i32
    return %c0_i32, %c0_i32_0 : i32, i32
  }
  func.func @transform_6(%arg0: i32) -> (i32, i32) {
    %c0_i32 = arith.constant 0 : i32
    %c0_i32_0 = arith.constant 0 : i32
    %c0_i32_1 = arith.constant 0 : i32
    return %c0_i32, %c0_i32_0 : i32, i32
  }
}

</mosaic_0001>

<llo_original>
// kernel: tpu_custom_call.1
$region0: #{tpu_custom_call.1}
  #allocation0 [shape = 'u32[]', space=smem, size = 0x4, offset = 0x4, fixed_abs, tag = 'smem constant byte address 0x4 - core index']
  #allocation1 [shape = 'u32[72,128]{1,0:T(1,128)}', space=vmem, size = 0x9000, scoped, tag = 'internal scratch']
  #allocation2 [shape = 'f32[64,512]{1,0:T(8,128)}', space=vmem, size = 0x20000, scoped, tag = 'scratch operand']
  #allocation3 [shape = 'f32[8,128]{1,0:T(8,128)}', space=vmem, size = 0x1000, scoped, tag = 'scratch operand']
  #allocation4 [shape = 'f32[8,128]{1,0:T(8,128)}', space=vmem, size = 0x1000, scoped, tag = 'scratch operand']
  %s0 = inlined_call_operand.hbm [shape: bf16[24,8,128], index: 0, kind: input, shape index: {}]
  %s1 = inlined_call_operand.hbm [shape: bf16[128,512], index: 1, kind: input, shape index: {}]
  %s2 = inlined_call_operand.hbm [shape: bf16[128,512], index: 2, kind: input, shape index: {}]
  %s3 = inlined_call_operand.hbm [shape: f32[1,512], index: 3, kind: input, shape index: {}]
  %s4 = inlined_call_operand.hbm [shape: bf16[128,128], index: 4, kind: input, shape index: {}]
  %s5 = inlined_call_operand.vmem [shape: f32[1,128], index: 5, kind: input, shape index: {}]
  %s6 = inlined_call_operand.hbm [shape: f32[8,128], index: 6, kind: output, shape index: {}]
  %s7 = sld [smem:[#allocation0]]
  $region85: #{tpu_custom_call.1} parent=0
    _
  %s9 = ssub.s32 1, %s7
  %s10 = scalar_select 0, %s9, %s7
  $region1: #{tpu_custom_call.1} parent=0
    #allocation5 [shape = 'u8[32768]{0}', space=vmem, size = 0x8000, scoped, tag = 'input window, operand 0']
    #allocation6 [shape = 's32[2]{0}', space=sflag, size = 0x8, scoped, tag = 'scoped memory for tpu_custom_call.1']
    #allocation7 [shape = 's32[2]{0}', space=sflag, size = 0x8, scoped, tag = 'scoped memory for tpu_custom_call.1']
    #allocation8 [shape = 'u8[131072]{0}', space=vmem, size = 0x20000, scoped, tag = 'input window, operand 1, single buffered']
    #allocation9 [shape = 's32[1]{0}', space=sflag, size = 0x4, scoped, tag = 'scoped memory for tpu_custom_call.1']
    #allocation10 [shape = 'u8[131072]{0}', space=vmem, size = 0x20000, scoped, tag = 'input window, operand 2, single buffered']
    #allocation11 [shape = 'u8[2048]{0}', space=vmem, size = 0x800, scoped, tag = 'input window, operand 3, single buffered']
    #allocation12 [shape = 's32[1]{0}', space=sflag, size = 0x4, scoped, tag = 'scoped memory for tpu_custom_call.1']
    #allocation13 [shape = 'u8[32768]{0}', space=vmem, size = 0x8000, scoped, tag = 'input window, operand 4, single buffered']
    #allocation14 [shape = 'u8[4096]{0}', space=vmem, size = 0x1000, scoped, tag = 'output window, operand 0, single buffered']
    %11 = vsyncpa [#allocation6], 0
    %s12 = scalar_lea.sflag [#allocation6], 1
    %13 = vsyncpa %s12, 0
    %14 = vsyncpa [#allocation9], 0
    %15 = vsyncpa [#allocation12], 0
    %16 = vsyncpa [#allocation7], 0
    loop: start=0, step=1, limit=5
    $region2: #{tpu_custom_call.1} parent=1 // loop_pre_header
      _
    $region3: #{tpu_custom_call.1} parent=1 // loop_header
      %s18 = sphi 0, %s22
      %p19 = scmp.ge.s32.totalorder %s18, 5
      %s28 = sphi 0, %s30
      %s31 = sphi 0, %s28
      %s32 = sphi 0, %s31
      %s48 = sphi 0, %s32
      %s52 = sphi 0, %s52
      %s54 = sphi 0, %s52
      %s55 = sphi 0, %s54
      %s69 = sphi 0, %s55
      %s73 = sphi 0, %s73
      %s75 = sphi 0, %s73
      %s76 = sphi 0, %s75
      %s90 = sphi 0, %s76
      %s94 = sphi 0, %s94
      %s96 = sphi 0, %s94
      %s97 = sphi 0, %s96
      %s111 = sphi 0, %s97
      %s115 = sphi 0, %s115
      %s117 = sphi 0, %s115
      %s118 = sphi 0, %s117
      %s132 = sphi 0, %s118
      %s136 = sphi 0, %s136
      %s138 = sphi 0, %s136
      %s139 = sphi 0, %s138
      %s153 = sphi 0, %s139
      %s157 = sphi 0, %s157
      %s159 = sphi 0, %s157
      %s160 = sphi 0, %s159
      %s174 = sphi 0, %s160
    $region4: #{tpu_custom_call.1} parent=1 // loop_header_branch
      %21 = sbr.rel (%p19) target = $region8
    $region5: #{tpu_custom_call.1} parent=1 // loop_body
      %s23 = ssub.s32 %s18, 1
      %s24 = ssub.s32 %s18, 2
      %s25 = sadd.s32 %s18, 1
      %s26 = ssub.s32 %s18, %s25
      %p27 = scmp.eq.s32.totalorder %s26, 0
      %s29 = sadd.s32 %s28, 1
      %s30 = scalar_select %p27, %s28, %s29
      %p33 = pneg %p27
      %p34 = scmp.eq.s32.totalorder %s18, 2
      %p35 = por %p33, %p34
      %p36 = scmp.ne.s32.totalorder %s28, %s31
      %p37 = scmp.eq.s32.totalorder %s18, 0
      %p38 = por %p36, %p37
      %p39 = scmp.ne.s32.totalorder %s28, %s31
      %p40 = scmp.eq.s32.totalorder %s23, 2
      %p41 = por %p39, %p40
      %p42 = scmp.ne.s32.totalorder %s31, %s32
      %p43 = scmp.eq.s32.totalorder %s23, 0
      %p44 = por %p42, %p43
      %p45 = scmp.ne.s32.totalorder %s31, %s32
      %p46 = scmp.eq.s32.totalorder %s24, 2
      %p47 = por %p45, %p46
      %p49 = scmp.ne.s32.totalorder %s32, %s48
      %p50 = scmp.eq.s32.totalorder %s24, 0
      %p51 = por %p49, %p50
      %s53 = sadd.s32 %s52, 1
      %p56 = scmp.eq.s32.totalorder %s18, 2
      %p57 = scmp.ne.s32.totalorder %s52, %s54
      %p58 = scmp.eq.s32.totalorder %s18, 0
      %p59 = por %p57, %p58
      %p60 = scmp.ne.s32.totalorder %s52, %s54
      %p61 = scmp.eq.s32.totalorder %s23, 2
      %p62 = por %p60, %p61
      %p63 = scmp.ne.s32.totalorder %s54, %s55
      %p64 = scmp.eq.s32.totalorder %s23, 0
      %p65 = por %p63, %p64
      %p66 = scmp.ne.s32.totalorder %s54, %s55
      %p67 = scmp.eq.s32.totalorder %s24, 2
      %p68 = por %p66, %p67
      %p70 = scmp.ne.s32.totalorder %s55, %s69
      %p71 = scmp.eq.s32.totalorder %s24, 0
      %p72 = por %p70, %p71
      %s74 = sadd.s32 %s73, 1
      %p77 = scmp.eq.s32.totalorder %s18, 2
      %p78 = scmp.ne.s32.totalorder %s73, %s75
      %p79 = scmp.eq.s32.totalorder %s18, 0
      %p80 = por %p78, %p79
      %p81 = scmp.ne.s32.totalorder %s73, %s75
      %p82 = scmp.eq.s32.totalorder %s23, 2
      %p83 = por %p81, %p82
      %p84 = scmp.ne.s32.totalorder %s75, %s76
      %p85 = scmp.eq.s32.totalorder %s23, 0
      %p86 = por %p84, %p85
      %p87 = scmp.ne.s32.totalorder %s75, %s76
      %p88 = scmp.eq.s32.totalorder %s24, 2
      %p89 = por %p87, %p88
      %p91 = scmp.ne.s32.totalorder %s76, %s90
      %p92 = scmp.eq.s32.totalorder %s24, 0
      %p93 = por %p91, %p92
      %s95 = sadd.s32 %s94, 1
      %p98 = scmp.eq.s32.totalorder %s18, 2
      %p99 = scmp.ne.s32.totalorder %s94, %s96
      %p100 = scmp.eq.s32.totalorder %s18, 0
      %p101 = por %p99, %p100
      %p102 = scmp.ne.s32.totalorder %s94, %s96
      %p103 = scmp.eq.s32.totalorder %s23, 2
      %p104 = por %p102, %p103
      %p105 = scmp.ne.s32.totalorder %s96, %s97
      %p106 = scmp.eq.s32.totalorder %s23, 0
      %p107 = por %p105, %p106
      %p108 = scmp.ne.s32.totalorder %s96, %s97
      %p109 = scmp.eq.s32.totalorder %s24, 2
      %p110 = por %p108, %p109
      %p112 = scmp.ne.s32.totalorder %s97, %s111
      %p113 = scmp.eq.s32.totalorder %s24, 0
      %p114 = por %p112, %p113
      %s116 = sadd.s32 %s115, 1
      %p119 = scmp.eq.s32.totalorder %s18, 2
      %p120 = scmp.ne.s32.totalorder %s115, %s117
      %p121 = scmp.eq.s32.totalorder %s18, 0
      %p122 = por %p120, %p121
      %p123 = scmp.ne.s32.totalorder %s115, %s117
      %p124 = scmp.eq.s32.totalorder %s23, 2
      %p125 = por %p123, %p124
      %p126 = scmp.ne.s32.totalorder %s117, %s118
      %p127 = scmp.eq.s32.totalorder %s23, 0
      %p128 = por %p126, %p127
      %p129 = scmp.ne.s32.totalorder %s117, %s118
      %p130 = scmp.eq.s32.totalorder %s24, 2
      %p131 = por %p129, %p130
      %p133 = scmp.ne.s32.totalorder %s118, %s132
      %p134 = scmp.eq.s32.totalorder %s24, 0
      %p135 = por %p133, %p134
      %s137 = sadd.s32 %s136, 1
      %p140 = scmp.eq.s32.totalorder %s18, 2
      %p141 = scmp.ne.s32.totalorder %s136, %s138
      %p142 = scmp.eq.s32.totalorder %s18, 0
      %p143 = por %p141, %p142
      %p144 = scmp.ne.s32.totalorder %s136, %s138
      %p145 = scmp.eq.s32.totalorder %s23, 2
      %p146 = por %p144, %p145
      %p147 = scmp.ne.s32.totalorder %s138, %s139
      %p148 = scmp.eq.s32.totalorder %s23, 0
      %p149 = por %p147, %p148
      %p150 = scmp.ne.s32.totalorder %s138, %s139
      %p151 = scmp.eq.s32.totalorder %s24, 2
      %p152 = por %p150, %p151
      %p154 = scmp.ne.s32.totalorder %s139, %s153
      %p155 = scmp.eq.s32.totalorder %s24, 0
      %p156 = por %p154, %p155
      %s158 = sadd.s32 %s157, 1
      %p161 = scmp.eq.s32.totalorder %s18, 2
      %p162 = scmp.ne.s32.totalorder %s157, %s159
      %p163 = scmp.eq.s32.totalorder %s18, 0
      %p164 = por %p162, %p163
      %p165 = scmp.ne.s32.totalorder %s157, %s159
      %p166 = scmp.eq.s32.totalorder %s23, 2
      %p167 = por %p165, %p166
      %p168 = scmp.ne.s32.totalorder %s159, %s160
      %p169 = scmp.eq.s32.totalorder %s23, 0
      %p170 = por %p168, %p169
      %p171 = scmp.ne.s32.totalorder %s159, %s160
      %p172 = scmp.eq.s32.totalorder %s24, 2
      %p173 = por %p171, %p172
      %p175 = scmp.ne.s32.totalorder %s160, %s174
      %p176 = scmp.eq.s32.totalorder %s24, 0
      %p177 = por %p175, %p176
      %p178 = scmp.le.s32.totalorder 1, %s18
      %p179 = scmp.lt.s32.totalorder %s18, 4
      %p180 = pnand %p178, %p179
      %p181 = pneg %p180
      // Predicated region
      $region9: #{tpu_custom_call.1} parent=5 // pred_check
        _
      $region10: #{tpu_custom_call.1} parent=5 // pred_check_branch
        %183 = sbr.rel (%p180) target = $region12
      $region11: #{tpu_custom_call.1} parent=5 // pred_region
        %s184 = ssub.s32 %s18, 1
        // Predicated region
        $region13: #{tpu_custom_call.1} parent=11 // pred_check
          %p185 = pneg %p65
        $region14: #{tpu_custom_call.1} parent=11 // pred_check_branch
          %187 = sbr.rel (%p185) target = $region16
        $region15: #{tpu_custom_call.1} parent=11 // pred_region
          %189 = vsyncadd [#allocation9], 0
          %s190 = sshll.u32 %s1, 4
          %s191 = int_to_ptr.hbm [resolvable:$true] %s190
          %s192 = sshll.u32 [#allocation8], 4
          %s193 = int_to_ptr.vmem [resolvable:$true] %s192
          %198 = dma.hbm_to_vmem [thread:$0]  %s191, 4096, %s193, [#allocation9], 256, 256, 16
        $region16: #{tpu_custom_call.1} parent=11 // pred_fallthru
          _
        // Predicated region
        $region17: #{tpu_custom_call.1} parent=11 // pred_check
          %p199 = pneg %p86
        $region18: #{tpu_custom_call.1} parent=11 // pred_check_branch
          %201 = sbr.rel (%p199) target = $region20
        $region19: #{tpu_custom_call.1} parent=11 // pred_region
          %203 = vsyncadd [#allocation9], 0
          %s204 = sshll.u32 %s2, 4
          %s205 = int_to_ptr.hbm [resolvable:$true] %s204
          %s206 = sshll.u32 [#allocation10], 4
          %s207 = int_to_ptr.vmem [resolvable:$true] %s206
          %212 = dma.hbm_to_vmem [thread:$0]  %s205, 4096, %s207, [#allocation9], 256, 256, 16
        $region20: #{tpu_custom_call.1} parent=11 // pred_fallthru
          _
        // Predicated region
        $region21: #{tpu_custom_call.1} parent=11 // pred_check
          %p213 = pneg %p107
        $region22: #{tpu_custom_call.1} parent=11 // pred_check_branch
          %215 = sbr.rel (%p213) target = $region24
        $region23: #{tpu_custom_call.1} parent=11 // pred_region
          %217 = vsyncadd [#allocation12], 0
          %s219 = sshll.u32 %s3, 4
          %s220 = int_to_ptr.hbm [resolvable:$true] %s219
          %s221 = sshll.u32 [#allocation11], 4
          %s222 = int_to_ptr.vmem [resolvable:$true] %s221
          %224 = dma.hbm_to_vmem [thread:$0]  %s220, 64, %s222, [#allocation12]
        $region24: #{tpu_custom_call.1} parent=11 // pred_fallthru
          _
        // Predicated region
        $region25: #{tpu_custom_call.1} parent=11 // pred_check
          %p225 = pneg %p128
        $region26: #{tpu_custom_call.1} parent=11 // pred_check_branch
          %227 = sbr.rel (%p225) target = $region28
        $region27: #{tpu_custom_call.1} parent=11 // pred_region
          %229 = vsyncadd [#allocation12], 0
          %s230 = sshll.u32 %s4, 4
          %s231 = int_to_ptr.hbm [resolvable:$true] %s230
          %s232 = sshll.u32 [#allocation13], 4
          %s233 = int_to_ptr.vmem [resolvable:$true] %s232
          %238 = dma.hbm_to_vmem [thread:$0]  %s231, 1024, %s233, [#allocation12], 64, 64, 4
        $region28: #{tpu_custom_call.1} parent=11 // pred_fallthru
          _
        // Predicated region
        $region29: #{tpu_custom_call.1} parent=11 // pred_check
          %p239 = pneg %p149
        $region30: #{tpu_custom_call.1} parent=11 // pred_check_branch
          %241 = sbr.rel (%p239) target = $region32
        $region31: #{tpu_custom_call.1} parent=11 // pred_region
          _
        $region32: #{tpu_custom_call.1} parent=11 // pred_fallthru
          _
      $region12: #{tpu_custom_call.1} parent=5 // pred_fallthru
        _
      %p242 = scmp.lt.s32.totalorder %s18, 3
      // Predicated region
      $region33: #{tpu_custom_call.1} parent=5 // pred_check
        %p243 = pneg %p242
      $region34: #{tpu_custom_call.1} parent=5 // pred_check_branch
        %245 = sbr.rel (%p243) target = $region36
      $region35: #{tpu_custom_call.1} parent=5 // pred_region
        // Predicated region
        $region37: #{tpu_custom_call.1} parent=35 // pred_check
          %p246 = pneg %p38
        $region38: #{tpu_custom_call.1} parent=35 // pred_check_branch
          %248 = sbr.rel (%p246) target = $region40
        $region39: #{tpu_custom_call.1} parent=35 // pred_region
          %s249 = sand.u32 %s28, 1
          %s250 = scalar_lea.sflag [#allocation6], %s249
          %s251 = sand.u32 %s28, 1
          %s252 = smul.addr %s251, 32
          %s253 = scalar_lea.vmem [#allocation5], %s252
          %s254 = smul.u32 8, %s18
          %256 = vsyncadd %s250, 0
          %s257 = smul.addr %s254, 4
          %s258 = scalar_lea.hbm %s0, %s257
          %s259 = sshll.u32 %s258, 4
          %s260 = int_to_ptr.hbm [resolvable:$true] %s259
          %s261 = sshll.u32 %s253, 4
          %s262 = int_to_ptr.vmem [resolvable:$true] %s261
          %267 = dma.hbm_to_vmem [thread:$0]  %s260, 512, %s262, %s250, 64, 64, 4
        $region40: #{tpu_custom_call.1} parent=35 // pred_fallthru
          _
      $region36: #{tpu_custom_call.1} parent=5 // pred_fallthru
        _
      %p268 = scmp.le.s32.totalorder 1, %s18
      %p269 = scmp.lt.s32.totalorder %s18, 4
      %p270 = pnand %p268, %p269
      %p271 = pneg %p270
      // Predicated region
      $region41: #{tpu_custom_call.1} parent=5 // pred_check
        _
      $region42: #{tpu_custom_call.1} parent=5 // pred_check_branch
        %273 = sbr.rel (%p270) target = $region44
      $region43: #{tpu_custom_call.1} parent=5 // pred_region
        %s274 = ssub.s32 %s18, 1
        %s275 = sand.u32 %s31, 1
        %s276 = scalar_lea.sflag [#allocation6], %s275
        %s277 = sand.u32 %s31, 1
        %s278 = smul.addr %s277, 32
        %s279 = scalar_lea.vmem [#allocation5], %s278
        // Predicated region
        $region45: #{tpu_custom_call.1} parent=43 // pred_check
          %p280 = pneg %p44
        $region46: #{tpu_custom_call.1} parent=43 // pred_check_branch
          %282 = sbr.rel (%p280) target = $region48
        $region47: #{tpu_custom_call.1} parent=43 // pred_region
          %284 = dma.done %s276, 512
        $region48: #{tpu_custom_call.1} parent=43 // pred_fallthru
          _
        // Predicated region
        $region49: #{tpu_custom_call.1} parent=43 // pred_check
          %p285 = pneg %p65
        $region50: #{tpu_custom_call.1} parent=43 // pred_check_branch
          %287 = sbr.rel (%p285) target = $region52
        $region51: #{tpu_custom_call.1} parent=43 // pred_region
          %289 = dma.done [#allocation9], 4096
        $region52: #{tpu_custom_call.1} parent=43 // pred_fallthru
          _
        // Predicated region
        $region53: #{tpu_custom_call.1} parent=43 // pred_check
          %p290 = pneg %p86
        $region54: #{tpu_custom_call.1} parent=43 // pred_check_branch
          %292 = sbr.rel (%p290) target = $region56
        $region55: #{tpu_custom_call.1} parent=43 // pred_region
          %294 = dma.done [#allocation9], 4096
        $region56: #{tpu_custom_call.1} parent=43 // pred_fallthru
          _
        // Predicated region
        $region57: #{tpu_custom_call.1} parent=43 // pred_check
          %p295 = pneg %p107
        $region58: #{tpu_custom_call.1} parent=43 // pred_check_branch
          %297 = sbr.rel (%p295) target = $region60
        $region59: #{tpu_custom_call.1} parent=43 // pred_region
          %299 = dma.done [#allocation12], 64
        $region60: #{tpu_custom_call.1} parent=43 // pred_fallthru
          _
        // Predicated region
        $region61: #{tpu_custom_call.1} parent=43 // pred_check
          %p300 = pneg %p128
        $region62: #{tpu_custom_call.1} parent=43 // pred_check_branch
          %302 = sbr.rel (%p300) target = $region64
        $region63: #{tpu_custom_call.1} parent=43 // pred_region
          %304 = dma.done [#allocation12], 1024
        $region64: #{tpu_custom_call.1} parent=43 // pred_fallthru
          _
        %s305 = sand.u32 %s31, 1
        %s306 = scalar_lea.sflag [#allocation6], %s305
        %s307 = sand.u32 %s31, 1
        %s308 = smul.addr %s307, 32
        %s309 = scalar_lea.vmem [#allocation5], %s308
        %p310 = pneg %p44
        %p311 = pneg %p41
        %p312 = pneg %p65
        %p313 = pneg %p62
        %p314 = pneg %p86
        %p315 = pneg %p83
        %p316 = pneg %p107
        %p317 = pneg %p104
        %p318 = pneg %p128
        %p319 = pneg %p125
        %p320 = pneg %p149
        %p321 = pneg %p146
        %p322 = pneg %p170
        %p323 = pneg %p167
        %s324 = smul.u32 8, %s23
        %p325 = scmp.eq.s32.totalorder %s23, 0
        // Predicated region
        $region65: #{tpu_custom_call.1} parent=43 // pred_check
          %p326 = pneg %p325
        $region66: #{tpu_custom_call.1} parent=43 // pred_check_branch
          %328 = sbr.rel (%p326) target = $region68
        $region67: #{tpu_custom_call.1} parent=43 // pred_region
          %329 = vst [vmem:[#allocation3] sm:$0xff] 0.0
          %330 = vst [vmem:[#allocation4] sm:$0xff] 0.0
        $region68: #{tpu_custom_call.1} parent=43 // pred_fallthru
          _
        %v331 = vld [vmem:[%s279] sm:$0xf]
        %v332 = vld [vmem:[%s279 + $0x4] sm:$0xf]
        %v333 = vld [vmem:[%s279 + $0x8] sm:$0xf]
        %v334 = vld [vmem:[%s279 + $0xc] sm:$0xf]
        %v335 = vld [vmem:[%s279 + $0x10] sm:$0xf]
        %v336 = vld [vmem:[%s279 + $0x14] sm:$0xf]
        %v337 = vld [vmem:[%s279 + $0x18] sm:$0xf]
        %v338 = vld [vmem:[%s279 + $0x1c] sm:$0xf]
        %v339 = vld [vmem:[#allocation8] sm:$0xff]
        %v340 = vld [vmem:[#allocation8 + $0x8] sm:$0xff]
        %v341 = vld [vmem:[#allocation8 + $0x10] sm:$0xff]
        %v342 = vld [vmem:[#allocation8 + $0x18] sm:$0xff]
        %v343 = vld [vmem:[#allocation8 + $0x20] sm:$0xff]
        %v344 = vld [vmem:[#allocation8 + $0x28] sm:$0xff]
        %v345 = vld [vmem:[#allocation8 + $0x30] sm:$0xff]
        %v346 = vld [vmem:[#allocation8 + $0x38] sm:$0xff]
        %v347 = vld [vmem:[#allocation8 + $0x40] sm:$0xff]
        %v348 = vld [vmem:[#allocation8 + $0x48] sm:$0xff]
        %v349 = vld [vmem:[#allocation8 + $0x50] sm:$0xff]
        %v350 = vld [vmem:[#allocation8 + $0x58] sm:$0xff]
        %v351 = vld [vmem:[#allocation8 + $0x60] sm:$0xff]
        %v352 = vld [vmem:[#allocation8 + $0x68] sm:$0xff]
        %v353 = vld [vmem:[#allocation8 + $0x70] sm:$0xff]
        %v354 = vld [vmem:[#allocation8 + $0x78] sm:$0xff]
        %v355 = vld [vmem:[#allocation8 + $0x80] sm:$0xff]
        %v356 = vld [vmem:[#allocation8 + $0x88] sm:$0xff]
        %v357 = vld [vmem:[#allocation8 + $0x90] sm:$0xff]
        %v358 = vld [vmem:[#allocation8 + $0x98] sm:$0xff]
        %v359 = vld [vmem:[#allocation8 + $0xa0] sm:$0xff]
        %v360 = vld [vmem:[#allocation8 + $0xa8] sm:$0xff]
        %v361 = vld [vmem:[#allocation8 + $0xb0] sm:$0xff]
        %v362 = vld [vmem:[#allocation8 + $0xb8] sm:$0xff]
        %v363 = vld [vmem:[#allocation8 + $0xc0] sm:$0xff]
        %v364 = vld [vmem:[#allocation8 + $0xc8] sm:$0xff]
        %v365 = vld [vmem:[#allocation8 + $0xd0] sm:$0xff]
        %v366 = vld [vmem:[#allocation8 + $0xd8] sm:$0xff]
        %v367 = vld [vmem:[#allocation8 + $0xe0] sm:$0xff]
        %v368 = vld [vmem:[#allocation8 + $0xe8] sm:$0xff]
        %v369 = vld [vmem:[#allocation8 + $0xf0] sm:$0xff]
        %v370 = vld [vmem:[#allocation8 + $0xf8] sm:$0xff]
        %v371 = vld [vmem:[#allocation11] sm:$0xf]
        %v373 = vperm.slane %v371, 0
        %v374 = vperm.slane %v371, 1
        %v375 = vperm.slane %v371, 2
        %v376 = vperm.slane %v371, 3
        %v389 = vunpack.c.l.b16 %v331
        %v390 = vunpack.c.l.b16 %v332
        %v391 = vunpack.c.l.b16 %v333
        %v392 = vunpack.c.l.b16 %v334
        %v393 = vunpack.c.l.b16 %v335
        %v394 = vunpack.c.l.b16 %v336
        %v395 = vunpack.c.l.b16 %v337
        %v396 = vunpack.c.l.b16 %v338
        %v397 = vpack.c.b16 %v390, %v389
        %v398 = vpack.c.b16 %v392, %v391
        %v399 = vpack.c.b16 %v394, %v393
        %v400 = vpack.c.b16 %v396, %v395
        %v437 = vunpack.c.l.b16 %v339
        %v438 = vunpack.c.h.b16 %v339
        %v439 = vunpack.c.l.b16 %v340
        %v440 = vunpack.c.h.b16 %v340
        %v441 = vunpack.c.l.b16 %v341
        %v442 = vunpack.c.h.b16 %v341
        %v443 = vunpack.c.l.b16 %v342
        %v444 = vunpack.c.h.b16 %v342
        %v445 = vunpack.c.l.b16 %v343
        %v446 = vunpack.c.h.b16 %v343
        %v447 = vunpack.c.l.b16 %v344
        %v448 = vunpack.c.h.b16 %v344
        %v449 = vunpack.c.l.b16 %v345
        %v450 = vunpack.c.h.b16 %v345
        %v451 = vunpack.c.l.b16 %v346
        %v452 = vunpack.c.h.b16 %v346
        %v453 = vunpack.c.l.b16 %v347
        %v454 = vunpack.c.h.b16 %v347
        %v455 = vunpack.c.l.b16 %v348
        %v456 = vunpack.c.h.b16 %v348
        %v457 = vunpack.c.l.b16 %v349
        %v458 = vunpack.c.h.b16 %v349
        %v459 = vunpack.c.l.b16 %v350
        %v460 = vunpack.c.h.b16 %v350
        %v461 = vunpack.c.l.b16 %v351
        %v462 = vunpack.c.h.b16 %v351
        %v463 = vunpack.c.l.b16 %v352
        %v464 = vunpack.c.h.b16 %v352
        %v465 = vunpack.c.l.b16 %v353
        %v466 = vunpack.c.h.b16 %v353
        %v467 = vunpack.c.l.b16 %v354
        %v468 = vunpack.c.h.b16 %v354
        %v469 = vunpack.c.l.b16 %v355
        %v470 = vunpack.c.h.b16 %v355
        %v471 = vunpack.c.l.b16 %v356
        %v472 = vunpack.c.h.b16 %v356
        %v473 = vunpack.c.l.b16 %v357
        %v474 = vunpack.c.h.b16 %v357
        %v475 = vunpack.c.l.b16 %v358
        %v476 = vunpack.c.h.b16 %v358
        %v477 = vunpack.c.l.b16 %v359
        %v478 = vunpack.c.h.b16 %v359
        %v479 = vunpack.c.l.b16 %v360
        %v480 = vunpack.c.h.b16 %v360
        %v481 = vunpack.c.l.b16 %v361
        %v482 = vunpack.c.h.b16 %v361
        %v483 = vunpack.c.l.b16 %v362
        %v484 = vunpack.c.h.b16 %v362
        %v485 = vunpack.c.l.b16 %v363
        %v486 = vunpack.c.h.b16 %v363
        %v487 = vunpack.c.l.b16 %v364
        %v488 = vunpack.c.h.b16 %v364
        %v489 = vunpack.c.l.b16 %v365
        %v490 = vunpack.c.h.b16 %v365
        %v491 = vunpack.c.l.b16 %v366
        %v492 = vunpack.c.h.b16 %v366
        %v493 = vunpack.c.l.b16 %v367
        %v494 = vunpack.c.h.b16 %v367
        %v495 = vunpack.c.l.b16 %v368
        %v496 = vunpack.c.h.b16 %v368
        %v497 = vunpack.c.l.b16 %v369
        %v498 = vunpack.c.h.b16 %v369
        %v499 = vunpack.c.l.b16 %v370
        %v500 = vunpack.c.h.b16 %v370
        %v501 = vpack.c.b16 %v441, %v437
        %v502 = vpack.c.b16 %v442, %v438
        %v503 = vpack.c.b16 %v443, %v439
        %v504 = vpack.c.b16 %v444, %v440
        %v505 = vpack.c.b16 %v449, %v445
        %v506 = vpack.c.b16 %v450, %v446
        %v507 = vpack.c.b16 %v451, %v447
        %v508 = vpack.c.b16 %v452, %v448
        %v509 = vpack.c.b16 %v457, %v453
        %v510 = vpack.c.b16 %v458, %v454
        %v511 = vpack.c.b16 %v459, %v455
        %v512 = vpack.c.b16 %v460, %v456
        %v513 = vpack.c.b16 %v465, %v461
        %v514 = vpack.c.b16 %v466, %v462
        %v515 = vpack.c.b16 %v467, %v463
        %v516 = vpack.c.b16 %v468, %v464
        %v517 = vpack.c.b16 %v473, %v469
        %v518 = vpack.c.b16 %v474, %v470
        %v519 = vpack.c.b16 %v475, %v471
        %v520 = vpack.c.b16 %v476, %v472
        %v521 = vpack.c.b16 %v481, %v477
        %v522 = vpack.c.b16 %v482, %v478
        %v523 = vpack.c.b16 %v483, %v479
        %v524 = vpack.c.b16 %v484, %v480
        %v525 = vpack.c.b16 %v489, %v485
        %v526 = vpack.c.b16 %v490, %v486
        %v527 = vpack.c.b16 %v491, %v487
        %v528 = vpack.c.b16 %v492, %v488
        %v529 = vpack.c.b16 %v497, %v493
        %v530 = vpack.c.b16 %v498, %v494
        %v531 = vpack.c.b16 %v499, %v495
        %v532 = vpack.c.b16 %v500, %v496
        %565 = vmatpush.bf16.msra.mxu0 %v529
        %566 = vmatpush.bf16.msra.mxu0 %v525
        %567 = vmatpush.bf16.msra.mxu0 %v521
        %568 = vmatpush.bf16.msra.mxu0 %v517
        %569 = vmatpush.bf16.msra.mxu0 %v513
        %570 = vmatpush.bf16.msra.mxu0 %v509
        %571 = vmatpush.bf16.msra.mxu0 %v505
        %572 = vmatpush.bf16.msra.mxu0 %v501
        %573 = vmatmul.bf16.gmra.mxu0 %v397
        %v574 = vpop.f32.mrf.mxu0
        %v575 = vadd.f32 %v373, %v574
        %v576 = vpop.f32.mrf.mxu0
        %v577 = vadd.f32 %v373, %v576
        %578 = vmatmul.bf16.gmra.mxu0 %v398
        %v579 = vpop.f32.mrf.mxu0
        %v580 = vadd.f32 %v373, %v579
        %v581 = vpop.f32.mrf.mxu0
        %v582 = vadd.f32 %v373, %v581
        %583 = vmatmul.bf16.gmra.mxu0 %v399
        %v584 = vpop.f32.mrf.mxu0
        %v585 = vadd.f32 %v373, %v584
        %v586 = vpop.f32.mrf.mxu0
        %v587 = vadd.f32 %v373, %v586
        %588 = vmatmul.bf16.gmra.mxu0 %v400
        %v589 = vpop.f32.mrf.mxu0
        %v590 = vadd.f32 %v373, %v589
        %v591 = vpop.f32.mrf.mxu0
        %v592 = vadd.f32 %v373, %v591
        %593 = vdwg.mxu0
        %594 = vmatpush.bf16.msra.mxu0 %v530
        %595 = vmatpush.bf16.msra.mxu0 %v526
        %596 = vmatpush.bf16.msra.mxu0 %v522
        %597 = vmatpush.bf16.msra.mxu0 %v518
        %598 = vmatpush.bf16.msra.mxu0 %v514
        %599 = vmatpush.bf16.msra.mxu0 %v510
        %600 = vmatpush.bf16.msra.mxu0 %v506
        %601 = vmatpush.bf16.msra.mxu0 %v502
        %602 = vmatmul.bf16.gmra.mxu0 %v397
        %v603 = vpop.f32.mrf.mxu0
        %v604 = vadd.f32 %v374, %v603
        %v605 = vpop.f32.mrf.mxu0
        %v606 = vadd.f32 %v374, %v605
        %607 = vmatmul.bf16.gmra.mxu0 %v398
        %v608 = vpop.f32.mrf.mxu0
        %v609 = vadd.f32 %v374, %v608
        %v610 = vpop.f32.mrf.mxu0
        %v611 = vadd.f32 %v374, %v610
        %612 = vmatmul.bf16.gmra.mxu0 %v399
        %v613 = vpop.f32.mrf.mxu0
        %v614 = vadd.f32 %v374, %v613
        %v615 = vpop.f32.mrf.mxu0
        %v616 = vadd.f32 %v374, %v615
        %617 = vmatmul.bf16.gmra.mxu0 %v400
        %v618 = vpop.f32.mrf.mxu0
        %v619 = vadd.f32 %v374, %v618
        %v620 = vpop.f32.mrf.mxu0
        %v621 = vadd.f32 %v374, %v620
        %622 = vdwg.mxu0
        %623 = vmatpush.bf16.msra.mxu0 %v531
        %624 = vmatpush.bf16.msra.mxu0 %v527
        %625 = vmatpush.bf16.msra.mxu0 %v523
        %626 = vmatpush.bf16.msra.mxu0 %v519
        %627 = vmatpush.bf16.msra.mxu0 %v515
        %628 = vmatpush.bf16.msra.mxu0 %v511
        %629 = vmatpush.bf16.msra.mxu0 %v507
        %630 = vmatpush.bf16.msra.mxu0 %v503
        %631 = vmatmul.bf16.gmra.mxu0 %v397
        %v632 = vpop.f32.mrf.mxu0
        %v633 = vadd.f32 %v375, %v632
        %v634 = vpop.f32.mrf.mxu0
        %v635 = vadd.f32 %v375, %v634
        %636 = vmatmul.bf16.gmra.mxu0 %v398
        %v637 = vpop.f32.mrf.mxu0
        %v638 = vadd.f32 %v375, %v637
        %v639 = vpop.f32.mrf.mxu0
        %v640 = vadd.f32 %v375, %v639
        %641 = vmatmul.bf16.gmra.mxu0 %v399
        %v642 = vpop.f32.mrf.mxu0
        %v643 = vadd.f32 %v375, %v642
        %v644 = vpop.f32.mrf.mxu0
        %v645 = vadd.f32 %v375, %v644
        %646 = vmatmul.bf16.gmra.mxu0 %v400
        %v647 = vpop.f32.mrf.mxu0
        %v648 = vadd.f32 %v375, %v647
        %v649 = vpop.f32.mrf.mxu0
        %v650 = vadd.f32 %v375, %v649
        %651 = vdwg.mxu0
        %652 = vmatpush.bf16.msra.mxu0 %v532
        %653 = vmatpush.bf16.msra.mxu0 %v528
        %654 = vmatpush.bf16.msra.mxu0 %v524
        %655 = vmatpush.bf16.msra.mxu0 %v520
        %656 = vmatpush.bf16.msra.mxu0 %v516
        %657 = vmatpush.bf16.msra.mxu0 %v512
        %658 = vmatpush.bf16.msra.mxu0 %v508
        %659 = vmatpush.bf16.msra.mxu0 %v504
        %660 = vmatmul.bf16.gmra.mxu0 %v397
        %v661 = vpop.f32.mrf.mxu0
        %v662 = vadd.f32 %v376, %v661
        %v663 = vpop.f32.mrf.mxu0
        %v664 = vadd.f32 %v376, %v663
        %665 = vmatmul.bf16.gmra.mxu0 %v398
        %v666 = vpop.f32.mrf.mxu0
        %v667 = vadd.f32 %v376, %v666
        %v668 = vpop.f32.mrf.mxu0
        %v669 = vadd.f32 %v376, %v668
        %670 = vmatmul.bf16.gmra.mxu0 %v399
        %v671 = vpop.f32.mrf.mxu0
        %v672 = vadd.f32 %v376, %v671
        %v673 = vpop.f32.mrf.mxu0
        %v674 = vadd.f32 %v376, %v673
        %675 = vmatmul.bf16.gmra.mxu0 %v400
        %v676 = vpop.f32.mrf.mxu0
        %v677 = vadd.f32 %v376, %v676
        %v678 = vpop.f32.mrf.mxu0
        %v679 = vadd.f32 %v376, %v678
        %680 = vdwg.mxu0
        %681 = vst [vmem:[#allocation2] sm:$0xff] %v575
        %682 = vst [vmem:[#allocation2 + $0x8] sm:$0xff] %v604
        %683 = vst [vmem:[#allocation2 + $0x10] sm:$0xff] %v633
        %684 = vst [vmem:[#allocation2 + $0x18] sm:$0xff] %v662
        %685 = vst [vmem:[#allocation2 + $0x20] sm:$0xff] %v577
        %686 = vst [vmem:[#allocation2 + $0x28] sm:$0xff] %v606
        %687 = vst [vmem:[#allocation2 + $0x30] sm:$0xff] %v635
        %688 = vst [vmem:[#allocation2 + $0x38] sm:$0xff] %v664
        %689 = vst [vmem:[#allocation2 + $0x40] sm:$0xff] %v580
        %690 = vst [vmem:[#allocation2 + $0x48] sm:$0xff] %v609
        %691 = vst [vmem:[#allocation2 + $0x50] sm:$0xff] %v638
        %692 = vst [vmem:[#allocation2 + $0x58] sm:$0xff] %v667
        %693 = vst [vmem:[#allocation2 + $0x60] sm:$0xff] %v582
        %694 = vst [vmem:[#allocation2 + $0x68] sm:$0xff] %v611
        %695 = vst [vmem:[#allocation2 + $0x70] sm:$0xff] %v640
        %696 = vst [vmem:[#allocation2 + $0x78] sm:$0xff] %v669
        %697 = vst [vmem:[#allocation2 + $0x80] sm:$0xff] %v585
        %698 = vst [vmem:[#allocation2 + $0x88] sm:$0xff] %v614
        %699 = vst [vmem:[#allocation2 + $0x90] sm:$0xff] %v643
        %700 = vst [vmem:[#allocation2 + $0x98] sm:$0xff] %v672
        %701 = vst [vmem:[#allocation2 + $0xa0] sm:$0xff] %v587
        %702 = vst [vmem:[#allocation2 + $0xa8] sm:$0xff] %v616
        %703 = vst [vmem:[#allocation2 + $0xb0] sm:$0xff] %v645
        %704 = vst [vmem:[#allocation2 + $0xb8] sm:$0xff] %v674
        %705 = vst [vmem:[#allocation2 + $0xc0] sm:$0xff] %v590
        %706 = vst [vmem:[#allocation2 + $0xc8] sm:$0xff] %v619
        %707 = vst [vmem:[#allocation2 + $0xd0] sm:$0xff] %v648
        %708 = vst [vmem:[#allocation2 + $0xd8] sm:$0xff] %v677
        %709 = vst [vmem:[#allocation2 + $0xe0] sm:$0xff] %v592
        %710 = vst [vmem:[#allocation2 + $0xe8] sm:$0xff] %v621
        %711 = vst [vmem:[#allocation2 + $0xf0] sm:$0xff] %v650
        %712 = vst [vmem:[#allocation2 + $0xf8] sm:$0xff] %v679
        %v713 = vld [vmem:[#allocation3] sm:$0xff]
        %v714 = vld [vmem:[#allocation4] sm:$0xff]
        %s715 = smul.u32 0, 4
        %s716 = smul.addr %s715, 8
        %s717 = scalar_lea.vmem [#allocation2], %s716
        %v718 = vld [vmem:[%s717] sm:$0xff]
        %v719 = vld [vmem:[%s717 + $0x8] sm:$0xff]
        %v720 = vld [vmem:[%s717 + $0x10] sm:$0xff]
        %v721 = vld [vmem:[%s717 + $0x18] sm:$0xff]
        %v722 = vpack.c.bf16 %v713, %v713
        %v723 = vld [vmem:[#allocation10] sm:$0xff]
        %v724 = vld [vmem:[#allocation10 + $0x8] sm:$0xff]
        %v725 = vld [vmem:[#allocation10 + $0x10] sm:$0xff]
        %v726 = vld [vmem:[#allocation10 + $0x18] sm:$0xff]
        %v727 = vld [vmem:[#allocation10 + $0x20] sm:$0xff]
        %v728 = vld [vmem:[#allocation10 + $0x28] sm:$0xff]
        %v729 = vld [vmem:[#allocation10 + $0x30] sm:$0xff]
        %v730 = vld [vmem:[#allocation10 + $0x38] sm:$0xff]
        %v731 = vld [vmem:[#allocation10 + $0x40] sm:$0xff]
        %v732 = vld [vmem:[#allocation10 + $0x48] sm:$0xff]
        %v733 = vld [vmem:[#allocation10 + $0x50] sm:$0xff]
        %v734 = vld [vmem:[#allocation10 + $0x58] sm:$0xff]
        %v735 = vld [vmem:[#allocation10 + $0x60] sm:$0xff]
        %v736 = vld [vmem:[#allocation10 + $0x68] sm:$0xff]
        %v737 = vld [vmem:[#allocation10 + $0x70] sm:$0xff]
        %v738 = vld [vmem:[#allocation10 + $0x78] sm:$0xff]
        %v739 = vld [vmem:[#allocation10 + $0x80] sm:$0xff]
        %v740 = vld [vmem:[#allocation10 + $0x88] sm:$0xff]
        %v741 = vld [vmem:[#allocation10 + $0x90] sm:$0xff]
        %v742 = vld [vmem:[#allocation10 + $0x98] sm:$0xff]
        %v743 = vld [vmem:[#allocation10 + $0xa0] sm:$0xff]
        %v744 = vld [vmem:[#allocation10 + $0xa8] sm:$0xff]
        %v745 = vld [vmem:[#allocation10 + $0xb0] sm:$0xff]
        %v746 = vld [vmem:[#allocation10 + $0xb8] sm:$0xff]
        %v747 = vld [vmem:[#allocation10 + $0xc0] sm:$0xff]
        %v748 = vld [vmem:[#allocation10 + $0xc8] sm:$0xff]
        %v749 = vld [vmem:[#allocation10 + $0xd0] sm:$0xff]
        %v750 = vld [vmem:[#allocation10 + $0xd8] sm:$0xff]
        %v751 = vld [vmem:[#allocation10 + $0xe0] sm:$0xff]
        %v752 = vld [vmem:[#allocation10 + $0xe8] sm:$0xff]
        %v753 = vld [vmem:[#allocation10 + $0xf0] sm:$0xff]
        %v754 = vld [vmem:[#allocation10 + $0xf8] sm:$0xff]
        %v787 = vunpack.c.l.b16 %v723
        %v788 = vunpack.c.h.b16 %v723
        %v789 = vunpack.c.l.b16 %v724
        %v790 = vunpack.c.h.b16 %v724
        %v791 = vunpack.c.l.b16 %v725
        %v792 = vunpack.c.h.b16 %v725
        %v793 = vunpack.c.l.b16 %v726
        %v794 = vunpack.c.h.b16 %v726
        %v795 = vunpack.c.l.b16 %v727
        %v796 = vunpack.c.h.b16 %v727
        %v797 = vunpack.c.l.b16 %v728
        %v798 = vunpack.c.h.b16 %v728
        %v799 = vunpack.c.l.b16 %v729
        %v800 = vunpack.c.h.b16 %v729
        %v801 = vunpack.c.l.b16 %v730
        %v802 = vunpack.c.h.b16 %v730
        %v803 = vunpack.c.l.b16 %v731
        %v804 = vunpack.c.h.b16 %v731
        %v805 = vunpack.c.l.b16 %v732
        %v806 = vunpack.c.h.b16 %v732
        %v807 = vunpack.c.l.b16 %v733
        %v808 = vunpack.c.h.b16 %v733
        %v809 = vunpack.c.l.b16 %v734
        %v810 = vunpack.c.h.b16 %v734
        %v811 = vunpack.c.l.b16 %v735
        %v812 = vunpack.c.h.b16 %v735
        %v813 = vunpack.c.l.b16 %v736
        %v814 = vunpack.c.h.b16 %v736
        %v815 = vunpack.c.l.b16 %v737
        %v816 = vunpack.c.h.b16 %v737
        %v817 = vunpack.c.l.b16 %v738
        %v818 = vunpack.c.h.b16 %v738
        %v819 = vunpack.c.l.b16 %v739
        %v820 = vunpack.c.h.b16 %v739
        %v821 = vunpack.c.l.b16 %v740
        %v822 = vunpack.c.h.b16 %v740
        %v823 = vunpack.c.l.b16 %v741
        %v824 = vunpack.c.h.b16 %v741
        %v825 = vunpack.c.l.b16 %v742
        %v826 = vunpack.c.h.b16 %v742
        %v827 = vunpack.c.l.b16 %v743
        %v828 = vunpack.c.h.b16 %v743
        %v829 = vunpack.c.l.b16 %v744
        %v830 = vunpack.c.h.b16 %v744
        %v831 = vunpack.c.l.b16 %v745
        %v832 = vunpack.c.h.b16 %v745
        %v833 = vunpack.c.l.b16 %v746
        %v834 = vunpack.c.h.b16 %v746
        %v835 = vunpack.c.l.b16 %v747
        %v836 = vunpack.c.h.b16 %v747
        %v837 = vunpack.c.l.b16 %v748
        %v838 = vunpack.c.h.b16 %v748
        %v839 = vunpack.c.l.b16 %v749
        %v840 = vunpack.c.h.b16 %v749
        %v841 = vunpack.c.l.b16 %v750
        %v842 = vunpack.c.h.b16 %v750
        %v843 = vunpack.c.l.b16 %v751
        %v844 = vunpack.c.h.b16 %v751
        %v845 = vunpack.c.l.b16 %v752
        %v846 = vunpack.c.h.b16 %v752
        %v847 = vunpack.c.l.b16 %v753
        %v848 = vunpack.c.h.b16 %v753
        %v849 = vunpack.c.l.b16 %v754
        %v850 = vunpack.c.h.b16 %v754
        %v851 = vpack.c.b16 %v791, %v787
        %v852 = vpack.c.b16 %v792, %v788
        %v853 = vpack.c.b16 %v793, %v789
        %v854 = vpack.c.b16 %v794, %v790
        %v855 = vpack.c.b16 %v799, %v795
        %v856 = vpack.c.b16 %v800, %v796
        %v857 = vpack.c.b16 %v801, %v797
        %v858 = vpack.c.b16 %v802, %v798
        %v859 = vpack.c.b16 %v807, %v803
        %v860 = vpack.c.b16 %v808, %v804
        %v861 = vpack.c.b16 %v809, %v805
        %v862 = vpack.c.b16 %v810, %v806
        %v863 = vpack.c.b16 %v815, %v811
        %v864 = vpack.c.b16 %v816, %v812
        %v865 = vpack.c.b16 %v817, %v813
        %v866 = vpack.c.b16 %v818, %v814
        %v867 = vpack.c.b16 %v823, %v819
        %v868 = vpack.c.b16 %v824, %v820
        %v869 = vpack.c.b16 %v825, %v821
        %v870 = vpack.c.b16 %v826, %v822
        %v871 = vpack.c.b16 %v831, %v827
        %v872 = vpack.c.b16 %v832, %v828
        %v873 = vpack.c.b16 %v833, %v829
        %v874 = vpack.c.b16 %v834, %v830
        %v875 = vpack.c.b16 %v839, %v835
        %v876 = vpack.c.b16 %v840, %v836
        %v877 = vpack.c.b16 %v841, %v837
        %v878 = vpack.c.b16 %v842, %v838
        %v879 = vpack.c.b16 %v847, %v843
        %v880 = vpack.c.b16 %v848, %v844
        %v881 = vpack.c.b16 %v849, %v845
        %v882 = vpack.c.b16 %v850, %v846
        %915 = vmatpush.bf16.msra.mxu0 %v879
        %916 = vmatpush.bf16.msra.mxu0 %v875
        %917 = vmatpush.bf16.msra.mxu0 %v871
        %918 = vmatpush.bf16.msra.mxu0 %v867
        %919 = vmatpush.bf16.msra.mxu0 %v863
        %920 = vmatpush.bf16.msra.mxu0 %v859
        %921 = vmatpush.bf16.msra.mxu0 %v855
        %922 = vmatpush.bf16.msra.mxu0 %v851
        %923 = vmatmul.bf16.gmra.mxu0 %v722
        %v924 = vpop.f32.mrf.mxu0
        %v925 = vadd.f32 0.0, %v924
        %v926 = vpop.f32.mrf.mxu0
        %927 = vdwg.mxu0
        %928 = vmatpush.bf16.msra.mxu0 %v880
        %929 = vmatpush.bf16.msra.mxu0 %v876
        %930 = vmatpush.bf16.msra.mxu0 %v872
        %931 = vmatpush.bf16.msra.mxu0 %v868
        %932 = vmatpush.bf16.msra.mxu0 %v864
        %933 = vmatpush.bf16.msra.mxu0 %v860
        %934 = vmatpush.bf16.msra.mxu0 %v856
        %935 = vmatpush.bf16.msra.mxu0 %v852
        %936 = vmatmul.bf16.gmra.mxu0 %v722
        %v937 = vpop.f32.mrf.mxu0
        %v938 = vadd.f32 0.0, %v937
        %v939 = vpop.f32.mrf.mxu0
        %940 = vdwg.mxu0
        %941 = vmatpush.bf16.msra.mxu0 %v881
        %942 = vmatpush.bf16.msra.mxu0 %v877
        %943 = vmatpush.bf16.msra.mxu0 %v873
        %944 = vmatpush.bf16.msra.mxu0 %v869
        %945 = vmatpush.bf16.msra.mxu0 %v865
        %946 = vmatpush.bf16.msra.mxu0 %v861
        %947 = vmatpush.bf16.msra.mxu0 %v857
        %948 = vmatpush.bf16.msra.mxu0 %v853
        %949 = vmatmul.bf16.gmra.mxu0 %v722
        %v950 = vpop.f32.mrf.mxu0
        %v951 = vadd.f32 0.0, %v950
        %v952 = vpop.f32.mrf.mxu0
        %953 = vdwg.mxu0
        %954 = vmatpush.bf16.msra.mxu0 %v882
        %955 = vmatpush.bf16.msra.mxu0 %v878
        %956 = vmatpush.bf16.msra.mxu0 %v874
        %957 = vmatpush.bf16.msra.mxu0 %v870
        %958 = vmatpush.bf16.msra.mxu0 %v866
        %959 = vmatpush.bf16.msra.mxu0 %v862
        %960 = vmatpush.bf16.msra.mxu0 %v858
        %961 = vmatpush.bf16.msra.mxu0 %v854
        %962 = vmatmul.bf16.gmra.mxu0 %v722
        %v963 = vpop.f32.mrf.mxu0
        %v964 = vadd.f32 0.0, %v963
        %v965 = vpop.f32.mrf.mxu0
        %966 = vdwg.mxu0
        %v967 = vadd.f32 %v718, %v925
        %v968 = vadd.f32 %v719, %v938
        %v969 = vadd.f32 %v720, %v951
        %v970 = vadd.f32 %v721, %v964
        %v971 = vxor.u32 %v967, 2147483648
        %v972 = vxor.u32 %v968, 2147483648
        %v973 = vxor.u32 %v969, 2147483648
        %v974 = vmul.f32 %v971, 1.442695
        %v975 = vpow.pop %v974
        %v976 = vmul.f32 %v972, 1.442695
        %v977 = vpow.pop %v976
        %v978 = vmul.f32 %v973, 1.442695
        %v979 = vpow.pop %v978
        %v980 = vadd.f32 %v975, 1.0
        %v981 = vadd.f32 %v977, 1.0
        %v982 = vadd.f32 %v979, 1.0
        %v983 = vrcp.pop %v980
        %v984 = vmul.f32 %v980, %v983
        %v985 = vsub.f32 1.0, %v984
        %v986 = vmul.f32 %v983, %v985
        %v987 = vadd.f32 %v983, %v986
        %vm988 = vweird.f32 %v980
        %vm989 = vweird.f32 %v983
        %vm990 = vmor %vm988, %vm989
        %v991 = vsel %vm990, %v983, %v987
        %v992 = vand.u32 2147483647, %v980
        %vm993 = vcmp.eq.f32.partialorder %v992, 8.507059e+37
        %v994 = vand.u32 %v980, 2147483648
        %v995 = vor.u32 1.1754944e-38, %v994
        %v996 = vsel %vm993, %v995, %v991
        %v997 = vmul.f32 1.0, %v996
        %v998 = vrcp.pop %v981
        %v999 = vmul.f32 %v981, %v998
        %v1000 = vsub.f32 1.0, %v999
        %v1001 = vmul.f32 %v998, %v1000
        %v1002 = vadd.f32 %v998, %v1001
        %vm1003 = vweird.f32 %v981
        %vm1004 = vweird.f32 %v998
        %vm1005 = vmor %vm1003, %vm1004
        %v1006 = vsel %vm1005, %v998, %v1002
        %v1007 = vand.u32 2147483647, %v981
        %vm1008 = vcmp.eq.f32.partialorder %v1007, 8.507059e+37
        %v1009 = vand.u32 %v981, 2147483648
        %v1010 = vor.u32 1.1754944e-38, %v1009
        %v1011 = vsel %vm1008, %v1010, %v1006
        %v1012 = vmul.f32 1.0, %v1011
        %v1013 = vrcp.pop %v982
        %v1014 = vmul.f32 %v982, %v1013
        %v1015 = vsub.f32 1.0, %v1014
        %v1016 = vmul.f32 %v1013, %v1015
        %v1017 = vadd.f32 %v1013, %v1016
        %vm1018 = vweird.f32 %v982
        %vm1019 = vweird.f32 %v1013
        %vm1020 = vmor %vm1018, %vm1019
        %v1021 = vsel %vm1020, %v1013, %v1017
        %v1022 = vand.u32 2147483647, %v982
        %vm1023 = vcmp.eq.f32.partialorder %v1022, 8.507059e+37
        %v1024 = vand.u32 %v982, 2147483648
        %v1025 = vor.u32 1.1754944e-38, %v1024
        %v1026 = vsel %vm1023, %v1025, %v1021
        %v1027 = vmul.f32 1.0, %v1026
        %v1028 = vtanh.pop %v970
        %v1029 = vmul.f32 %v1012, %v714
        %v1030 = vmul.f32 %v997, %v1028
        %v1031 = vadd.f32 %v1029, %v1030
        %v1032 = vtanh.pop %v1031
        %v1033 = vmul.f32 %v1027, %v1032
        %s1034 = smul.u32 %s23, 8
        %p1035 = scmp.lt.s32.totalorder %s1034, 20
        %s1036 = scalar_select %p1035, 1, 0
        %v1037 = vstv %s1036
        %vm1038 = vcmp.eq.s32.totalorder %v1037, 1
        %v1039 = vsel %vm1038, %v1033, %v713
        %v1040 = vsel %vm1038, %v1031, %v714
        %s1041 = smul.u32 1, 4
        %s1042 = smul.addr %s1041, 8
        %s1043 = scalar_lea.vmem [#allocation2], %s1042
        %v1044 = vld [vmem:[%s1043] sm:$0xff]
        %v1045 = vld [vmem:[%s1043 + $0x8] sm:$0xff]
        %v1046 = vld [vmem:[%s1043 + $0x10] sm:$0xff]
        %v1047 = vld [vmem:[%s1043 + $0x18] sm:$0xff]
        %v1048 = vpack.c.bf16 %v1039, %v1039
        %1049 = vmatpush.bf16.msra.mxu0 %v879
        %1050 = vmatpush.bf16.msra.mxu0 %v875
        %1051 = vmatpush.bf16.msra.mxu0 %v871
        %1052 = vmatpush.bf16.msra.mxu0 %v867
        %1053 = vmatpush.bf16.msra.mxu0 %v863
        %1054 = vmatpush.bf16.msra.mxu0 %v859
        %1055 = vmatpush.bf16.msra.mxu0 %v855
        %1056 = vmatpush.bf16.msra.mxu0 %v851
        %1057 = vmatmul.bf16.gmra.mxu0 %v1048
        %v1058 = vpop.f32.mrf.mxu0
        %v1059 = vadd.f32 0.0, %v1058
        %v1060 = vpop.f32.mrf.mxu0
        %1061 = vdwg.mxu0
        %1062 = vmatpush.bf16.msra.mxu0 %v880
        %1063 = vmatpush.bf16.msra.mxu0 %v876
        %1064 = vmatpush.bf16.msra.mxu0 %v872
        %1065 = vmatpush.bf16.msra.mxu0 %v868
        %1066 = vmatpush.bf16.msra.mxu0 %v864
        %1067 = vmatpush.bf16.msra.mxu0 %v860
        %1068 = vmatpush.bf16.msra.mxu0 %v856
        %1069 = vmatpush.bf16.msra.mxu0 %v852
        %1070 = vmatmul.bf16.gmra.mxu0 %v1048
        %v1071 = vpop.f32.mrf.mxu0
        %v1072 = vadd.f32 0.0, %v1071
        %v1073 = vpop.f32.mrf.mxu0
        %1074 = vdwg.mxu0
        %1075 = vmatpush.bf16.msra.mxu0 %v881
        %1076 = vmatpush.bf16.msra.mxu0 %v877
        %1077 = vmatpush.bf16.msra.mxu0 %v873
        %1078 = vmatpush.bf16.msra.mxu0 %v869
        %1079 = vmatpush.bf16.msra.mxu0 %v865
        %1080 = vmatpush.bf16.msra.mxu0 %v861
        %1081 = vmatpush.bf16.msra.mxu0 %v857
        %1082 = vmatpush.bf16.msra.mxu0 %v853
        %1083 = vmatmul.bf16.gmra.mxu0 %v1048
        %v1084 = vpop.f32.mrf.mxu0
        %v1085 = vadd.f32 0.0, %v1084
        %v1086 = vpop.f32.mrf.mxu0
        %1087 = vdwg.mxu0
        %1088 = vmatpush.bf16.msra.mxu0 %v882
        %1089 = vmatpush.bf16.msra.mxu0 %v878
        %1090 = vmatpush.bf16.msra.mxu0 %v874
        %1091 = vmatpush.bf16.msra.mxu0 %v870
        %1092 = vmatpush.bf16.msra.mxu0 %v866
        %1093 = vmatpush.bf16.msra.mxu0 %v862
        %1094 = vmatpush.bf16.msra.mxu0 %v858
        %1095 = vmatpush.bf16.msra.mxu0 %v854
        %1096 = vmatmul.bf16.gmra.mxu0 %v1048
        %v1097 = vpop.f32.mrf.mxu0
        %v1098 = vadd.f32 0.0, %v1097
        %v1099 = vpop.f32.mrf.mxu0
        %1100 = vdwg.mxu0
        %v1101 = vadd.f32 %v1044, %v1059
        %v1102 = vadd.f32 %v1045, %v1072
        %v1103 = vadd.f32 %v1046, %v1085
        %v1104 = vadd.f32 %v1047, %v1098
        %v1105 = vxor.u32 %v1101, 2147483648
        %v1106 = vxor.u32 %v1102, 2147483648
        %v1107 = vxor.u32 %v1103, 2147483648
        %v1108 = vmul.f32 %v1105, 1.442695
        %v1109 = vpow.pop %v1108
        %v1110 = vmul.f32 %v1106, 1.442695
        %v1111 = vpow.pop %v1110
        %v1112 = vmul.f32 %v1107, 1.442695
        %v1113 = vpow.pop %v1112
        %v1114 = vadd.f32 %v1109, 1.0
        %v1115 = vadd.f32 %v1111, 1.0
        %v1116 = vadd.f32 %v1113, 1.0
        %v1117 = vrcp.pop %v1114
        %v1118 = vmul.f32 %v1114, %v1117
        %v1119 = vsub.f32 1.0, %v1118
        %v1120 = vmul.f32 %v1117, %v1119
        %v1121 = vadd.f32 %v1117, %v1120
        %vm1122 = vweird.f32 %v1114
        %vm1123 = vweird.f32 %v1117
        %vm1124 = vmor %vm1122, %vm1123
        %v1125 = vsel %vm1124, %v1117, %v1121
        %v1126 = vand.u32 2147483647, %v1114
        %vm1127 = vcmp.eq.f32.partialorder %v1126, 8.507059e+37
        %v1128 = vand.u32 %v1114, 2147483648
        %v1129 = vor.u32 1.1754944e-38, %v1128
        %v1130 = vsel %vm1127, %v1129, %v1125
        %v1131 = vmul.f32 1.0, %v1130
        %v1132 = vrcp.pop %v1115
        %v1133 = vmul.f32 %v1115, %v1132
        %v1134 = vsub.f32 1.0, %v1133
        %v1135 = vmul.f32 %v1132, %v1134
        %v1136 = vadd.f32 %v1132, %v1135
        %vm1137 = vweird.f32 %v1115
        %vm1138 = vweird.f32 %v1132
        %vm1139 = vmor %vm1137, %vm1138
        %v1140 = vsel %vm1139, %v1132, %v1136
        %v1141 = vand.u32 2147483647, %v1115
        %vm1142 = vcmp.eq.f32.partialorder %v1141, 8.507059e+37
        %v1143 = vand.u32 %v1115, 2147483648
        %v1144 = vor.u32 1.1754944e-38, %v1143
        %v1145 = vsel %vm1142, %v1144, %v1140
        %v1146 = vmul.f32 1.0, %v1145
        %v1147 = vrcp.pop %v1116
        %v1148 = vmul.f32 %v1116, %v1147
        %v1149 = vsub.f32 1.0, %v1148
        %v1150 = vmul.f32 %v1147, %v1149
        %v1151 = vadd.f32 %v1147, %v1150
        %vm1152 = vweird.f32 %v1116
        %vm1153 = vweird.f32 %v1147
        %vm1154 = vmor %vm1152, %vm1153
        %v1155 = vsel %vm1154, %v1147, %v1151
        %v1156 = vand.u32 2147483647, %v1116
        %vm1157 = vcmp.eq.f32.partialorder %v1156, 8.507059e+37
        %v1158 = vand.u32 %v1116, 2147483648
        %v1159 = vor.u32 1.1754944e-38, %v1158
        %v1160 = vsel %vm1157, %v1159, %v1155
        %v1161 = vmul.f32 1.0, %v1160
        %v1162 = vtanh.pop %v1104
        %v1163 = vmul.f32 %v1146, %v1040
        %v1164 = vmul.f32 %v1131, %v1162
        %v1165 = vadd.f32 %v1163, %v1164
        %v1166 = vtanh.pop %v1165
        %v1167 = vmul.f32 %v1161, %v1166
        %s1168 = sadd.s32 %s1034, 1
        %p1169 = scmp.lt.s32.totalorder %s1168, 20
        %s1170 = scalar_select %p1169, 1, 0
        %v1171 = vstv %s1170
        %vm1172 = vcmp.eq.s32.totalorder %v1171, 1
        %v1173 = vsel %vm1172, %v1167, %v1039
        %v1174 = vsel %vm1172, %v1165, %v1040
        %s1175 = smul.u32 2, 4
        %s1176 = smul.addr %s1175, 8
        %s1177 = scalar_lea.vmem [#allocation2], %s1176
        %v1178 = vld [vmem:[%s1177] sm:$0xff]
        %v1179 = vld [vmem:[%s1177 + $0x8] sm:$0xff]
        %v1180 = vld [vmem:[%s1177 + $0x10] sm:$0xff]
        %v1181 = vld [vmem:[%s1177 + $0x18] sm:$0xff]
        %v1182 = vpack.c.bf16 %v1173, %v1173
        %1183 = vmatpush.bf16.msra.mxu0 %v879
        %1184 = vmatpush.bf16.msra.mxu0 %v875
        %1185 = vmatpush.bf16.msra.mxu0 %v871
        %1186 = vmatpush.bf16.msra.mxu0 %v867
        %1187 = vmatpush.bf16.msra.mxu0 %v863
        %1188 = vmatpush.bf16.msra.mxu0 %v859
        %1189 = vmatpush.bf16.msra.mxu0 %v855
        %1190 = vmatpush.bf16.msra.mxu0 %v851
        %1191 = vmatmul.bf16.gmra.mxu0 %v1182
        %v1192 = vpop.f32.mrf.mxu0
        %v1193 = vadd.f32 0.0, %v1192
        %v1194 = vpop.f32.mrf.mxu0
        %1195 = vdwg.mxu0
        %1196 = vmatpush.bf16.msra.mxu0 %v880
        %1197 = vmatpush.bf16.msra.mxu0 %v876
        %1198 = vmatpush.bf16.msra.mxu0 %v872
        %1199 = vmatpush.bf16.msra.mxu0 %v868
        %1200 = vmatpush.bf16.msra.mxu0 %v864
        %1201 = vmatpush.bf16.msra.mxu0 %v860
        %1202 = vmatpush.bf16.msra.mxu0 %v856
        %1203 = vmatpush.bf16.msra.mxu0 %v852
        %1204 = vmatmul.bf16.gmra.mxu0 %v1182
        %v1205 = vpop.f32.mrf.mxu0
        %v1206 = vadd.f32 0.0, %v1205
        %v1207 = vpop.f32.mrf.mxu0
        %1208 = vdwg.mxu0
        %1209 = vmatpush.bf16.msra.mxu0 %v881
        %1210 = vmatpush.bf16.msra.mxu0 %v877
        %1211 = vmatpush.bf16.msra.mxu0 %v873
        %1212 = vmatpush.bf16.msra.mxu0 %v869
        %1213 = vmatpush.bf16.msra.mxu0 %v865
        %1214 = vmatpush.bf16.msra.mxu0 %v861
        %1215 = vmatpush.bf16.msra.mxu0 %v857
        %1216 = vmatpush.bf16.msra.mxu0 %v853
        %1217 = vmatmul.bf16.gmra.mxu0 %v1182
        %v1218 = vpop.f32.mrf.mxu0
        %v1219 = vadd.f32 0.0, %v1218
        %v1220 = vpop.f32.mrf.mxu0
        %1221 = vdwg.mxu0
        %1222 = vmatpush.bf16.msra.mxu0 %v882
        %1223 = vmatpush.bf16.msra.mxu0 %v878
        %1224 = vmatpush.bf16.msra.mxu0 %v874
        %1225 = vmatpush.bf16.msra.mxu0 %v870
        %1226 = vmatpush.bf16.msra.mxu0 %v866
        %1227 = vmatpush.bf16.msra.mxu0 %v862
        %1228 = vmatpush.bf16.msra.mxu0 %v858
        %1229 = vmatpush.bf16.msra.mxu0 %v854
        %1230 = vmatmul.bf16.gmra.mxu0 %v1182
        %v1231 = vpop.f32.mrf.mxu0
        %v1232 = vadd.f32 0.0, %v1231
        %v1233 = vpop.f32.mrf.mxu0
        %1234 = vdwg.mxu0
        %v1235 = vadd.f32 %v1178, %v1193
        %v1236 = vadd.f32 %v1179, %v1206
        %v1237 = vadd.f32 %v1180, %v1219
        %v1238 = vadd.f32 %v1181, %v1232
        %v1239 = vxor.u32 %v1235, 2147483648
        %v1240 = vxor.u32 %v1236, 2147483648
        %v1241 = vxor.u32 %v1237, 2147483648
        %v1242 = vmul.f32 %v1239, 1.442695
        %v1243 = vpow.pop %v1242
        %v1244 = vmul.f32 %v1240, 1.442695
        %v1245 = vpow.pop %v1244
        %v1246 = vmul.f32 %v1241, 1.442695
        %v1247 = vpow.pop %v1246
        %v1248 = vadd.f32 %v1243, 1.0
        %v1249 = vadd.f32 %v1245, 1.0
        %v1250 = vadd.f32 %v1247, 1.0
        %v1251 = vrcp.pop %v1248
        %v1252 = vmul.f32 %v1248, %v1251
        %v1253 = vsub.f32 1.0, %v1252
        %v1254 = vmul.f32 %v1251, %v1253
        %v1255 = vadd.f32 %v1251, %v1254
        %vm1256 = vweird.f32 %v1248
        %vm1257 = vweird.f32 %v1251
        %vm1258 = vmor %vm1256, %vm1257
        %v1259 = vsel %vm1258, %v1251, %v1255
        %v1260 = vand.u32 2147483647, %v1248
        %vm1261 = vcmp.eq.f32.partialorder %v1260, 8.507059e+37
        %v1262 = vand.u32 %v1248, 2147483648
        %v1263 = vor.u32 1.1754944e-38, %v1262
        %v1264 = vsel %vm1261, %v1263, %v1259
        %v1265 = vmul.f32 1.0, %v1264
        %v1266 = vrcp.pop %v1249
        %v1267 = vmul.f32 %v1249, %v1266
        %v1268 = vsub.f32 1.0, %v1267
        %v1269 = vmul.f32 %v1266, %v1268
        %v1270 = vadd.f32 %v1266, %v1269
        %vm1271 = vweird.f32 %v1249
        %vm1272 = vweird.f32 %v1266
        %vm1273 = vmor %vm1271, %vm1272
        %v1274 = vsel %vm1273, %v1266, %v1270
        %v1275 = vand.u32 2147483647, %v1249
        %vm1276 = vcmp.eq.f32.partialorder %v1275, 8.507059e+37
        %v1277 = vand.u32 %v1249, 2147483648
        %v1278 = vor.u32 1.1754944e-38, %v1277
        %v1279 = vsel %vm1276, %v1278, %v1274
        %v1280 = vmul.f32 1.0, %v1279
        %v1281 = vrcp.pop %v1250
        %v1282 = vmul.f32 %v1250, %v1281
        %v1283 = vsub.f32 1.0, %v1282
        %v1284 = vmul.f32 %v1281, %v1283
        %v1285 = vadd.f32 %v1281, %v1284
        %vm1286 = vweird.f32 %v1250
        %vm1287 = vweird.f32 %v1281
        %vm1288 = vmor %vm1286, %vm1287
        %v1289 = vsel %vm1288, %v1281, %v1285
        %v1290 = vand.u32 2147483647, %v1250
        %vm1291 = vcmp.eq.f32.partialorder %v1290, 8.507059e+37
        %v1292 = vand.u32 %v1250, 2147483648
        %v1293 = vor.u32 1.1754944e-38, %v1292
        %v1294 = vsel %vm1291, %v1293, %v1289
        %v1295 = vmul.f32 1.0, %v1294
        %v1296 = vtanh.pop %v1238
        %v1297 = vmul.f32 %v1280, %v1174
        %v1298 = vmul.f32 %v1265, %v1296
        %v1299 = vadd.f32 %v1297, %v1298
        %v1300 = vtanh.pop %v1299
        %v1301 = vmul.f32 %v1295, %v1300
        %s1302 = sadd.s32 %s1034, 2
        %p1303 = scmp.lt.s32.totalorder %s1302, 20
        %s1304 = scalar_select %p1303, 1, 0
        %v1305 = vstv %s1304
        %vm1306 = vcmp.eq.s32.totalorder %v1305, 1
        %v1307 = vsel %vm1306, %v1301, %v1173
        %v1308 = vsel %vm1306, %v1299, %v1174
        %s1309 = smul.u32 3, 4
        %s1310 = smul.addr %s1309, 8
        %s1311 = scalar_lea.vmem [#allocation2], %s1310
        %v1312 = vld [vmem:[%s1311] sm:$0xff]
        %v1313 = vld [vmem:[%s1311 + $0x8] sm:$0xff]
        %v1314 = vld [vmem:[%s1311 + $0x10] sm:$0xff]
        %v1315 = vld [vmem:[%s1311 + $0x18] sm:$0xff]
        %v1316 = vpack.c.bf16 %v1307, %v1307
        %1317 = vmatpush.bf16.msra.mxu0 %v879
        %1318 = vmatpush.bf16.msra.mxu0 %v875
        %1319 = vmatpush.bf16.msra.mxu0 %v871
        %1320 = vmatpush.bf16.msra.mxu0 %v867
        %1321 = vmatpush.bf16.msra.mxu0 %v863
        %1322 = vmatpush.bf16.msra.mxu0 %v859
        %1323 = vmatpush.bf16.msra.mxu0 %v855
        %1324 = vmatpush.bf16.msra.mxu0 %v851
        %1325 = vmatmul.bf16.gmra.mxu0 %v1316
        %v1326 = vpop.f32.mrf.mxu0
        %v1327 = vadd.f32 0.0, %v1326
        %v1328 = vpop.f32.mrf.mxu0
        %1329 = vdwg.mxu0
        %1330 = vmatpush.bf16.msra.mxu0 %v880
        %1331 = vmatpush.bf16.msra.mxu0 %v876
        %1332 = vmatpush.bf16.msra.mxu0 %v872
        %1333 = vmatpush.bf16.msra.mxu0 %v868
        %1334 = vmatpush.bf16.msra.mxu0 %v864
        %1335 = vmatpush.bf16.msra.mxu0 %v860
        %1336 = vmatpush.bf16.msra.mxu0 %v856
        %1337 = vmatpush.bf16.msra.mxu0 %v852
        %1338 = vmatmul.bf16.gmra.mxu0 %v1316
        %v1339 = vpop.f32.mrf.mxu0
        %v1340 = vadd.f32 0.0, %v1339
        %v1341 = vpop.f32.mrf.mxu0
        %1342 = vdwg.mxu0
        %1343 = vmatpush.bf16.msra.mxu0 %v881
        %1344 = vmatpush.bf16.msra.mxu0 %v877
        %1345 = vmatpush.bf16.msra.mxu0 %v873
        %1346 = vmatpush.bf16.msra.mxu0 %v869
        %1347 = vmatpush.bf16.msra.mxu0 %v865
        %1348 = vmatpush.bf16.msra.mxu0 %v861
        %1349 = vmatpush.bf16.msra.mxu0 %v857
        %1350 = vmatpush.bf16.msra.mxu0 %v853
        %1351 = vmatmul.bf16.gmra.mxu0 %v1316
        %v1352 = vpop.f32.mrf.mxu0
        %v1353 = vadd.f32 0.0, %v1352
        %v1354 = vpop.f32.mrf.mxu0
        %1355 = vdwg.mxu0
        %1356 = vmatpush.bf16.msra.mxu0 %v882
        %1357 = vmatpush.bf16.msra.mxu0 %v878
        %1358 = vmatpush.bf16.msra.mxu0 %v874
        %1359 = vmatpush.bf16.msra.mxu0 %v870
        %1360 = vmatpush.bf16.msra.mxu0 %v866
        %1361 = vmatpush.bf16.msra.mxu0 %v862
        %1362 = vmatpush.bf16.msra.mxu0 %v858
        %1363 = vmatpush.bf16.msra.mxu0 %v854
        %1364 = vmatmul.bf16.gmra.mxu0 %v1316
        %v1365 = vpop.f32.mrf.mxu0
        %v1366 = vadd.f32 0.0, %v1365
        %v1367 = vpop.f32.mrf.mxu0
        %1368 = vdwg.mxu0
        %v1369 = vadd.f32 %v1312, %v1327
        %v1370 = vadd.f32 %v1313, %v1340
        %v1371 = vadd.f32 %v1314, %v1353
        %v1372 = vadd.f32 %v1315, %v1366
        %v1373 = vxor.u32 %v1369, 2147483648
        %v1374 = vxor.u32 %v1370, 2147483648
        %v1375 = vxor.u32 %v1371, 2147483648
        %v1376 = vmul.f32 %v1373, 1.442695
        %v1377 = vpow.pop %v1376
        %v1378 = vmul.f32 %v1374, 1.442695
        %v1379 = vpow.pop %v1378
        %v1380 = vmul.f32 %v1375, 1.442695
        %v1381 = vpow.pop %v1380
        %v1382 = vadd.f32 %v1377, 1.0
        %v1383 = vadd.f32 %v1379, 1.0
        %v1384 = vadd.f32 %v1381, 1.0
        %v1385 = vrcp.pop %v1382
        %v1386 = vmul.f32 %v1382, %v1385
        %v1387 = vsub.f32 1.0, %v1386
        %v1388 = vmul.f32 %v1385, %v1387
        %v1389 = vadd.f32 %v1385, %v1388
        %vm1390 = vweird.f32 %v1382
        %vm1391 = vweird.f32 %v1385
        %vm1392 = vmor %vm1390, %vm1391
        %v1393 = vsel %vm1392, %v1385, %v1389
        %v1394 = vand.u32 2147483647, %v1382
        %vm1395 = vcmp.eq.f32.partialorder %v1394, 8.507059e+37
        %v1396 = vand.u32 %v1382, 2147483648
        %v1397 = vor.u32 1.1754944e-38, %v1396
        %v1398 = vsel %vm1395, %v1397, %v1393
        %v1399 = vmul.f32 1.0, %v1398
        %v1400 = vrcp.pop %v1383
        %v1401 = vmul.f32 %v1383, %v1400
        %v1402 = vsub.f32 1.0, %v1401
        %v1403 = vmul.f32 %v1400, %v1402
        %v1404 = vadd.f32 %v1400, %v1403
        %vm1405 = vweird.f32 %v1383
        %vm1406 = vweird.f32 %v1400
        %vm1407 = vmor %vm1405, %vm1406
        %v1408 = vsel %vm1407, %v1400, %v1404
        %v1409 = vand.u32 2147483647, %v1383
        %vm1410 = vcmp.eq.f32.partialorder %v1409, 8.507059e+37
        %v1411 = vand.u32 %v1383, 2147483648
        %v1412 = vor.u32 1.1754944e-38, %v1411
        %v1413 = vsel %vm1410, %v1412, %v1408
        %v1414 = vmul.f32 1.0, %v1413
        %v1415 = vrcp.pop %v1384
        %v1416 = vmul.f32 %v1384, %v1415
        %v1417 = vsub.f32 1.0, %v1416
        %v1418 = vmul.f32 %v1415, %v1417
        %v1419 = vadd.f32 %v1415, %v1418
        %vm1420 = vweird.f32 %v1384
        %vm1421 = vweird.f32 %v1415
        %vm1422 = vmor %vm1420, %vm1421
        %v1423 = vsel %vm1422, %v1415, %v1419
        %v1424 = vand.u32 2147483647, %v1384
        %vm1425 = vcmp.eq.f32.partialorder %v1424, 8.507059e+37
        %v1426 = vand.u32 %v1384, 2147483648
        %v1427 = vor.u32 1.1754944e-38, %v1426
        %v1428 = vsel %vm1425, %v1427, %v1423
        %v1429 = vmul.f32 1.0, %v1428
        %v1430 = vtanh.pop %v1372
        %v1431 = vmul.f32 %v1414, %v1308
        %v1432 = vmul.f32 %v1399, %v1430
        %v1433 = vadd.f32 %v1431, %v1432
        %v1434 = vtanh.pop %v1433
        %v1435 = vmul.f32 %v1429, %v1434
        %s1436 = sadd.s32 %s1034, 3
        %p1437 = scmp.lt.s32.totalorder %s1436, 20
        %s1438 = scalar_select %p1437, 1, 0
        %v1439 = vstv %s1438
        %vm1440 = vcmp.eq.s32.totalorder %v1439, 1
        %v1441 = vsel %vm1440, %v1435, %v1307
        %v1442 = vsel %vm1440, %v1433, %v1308
        %s1443 = smul.u32 4, 4
        %s1444 = smul.addr %s1443, 8
        %s1445 = scalar_lea.vmem [#allocation2], %s1444
        %v1446 = vld [vmem:[%s1445] sm:$0xff]
        %v1447 = vld [vmem:[%s1445 + $0x8] sm:$0xff]
        %v1448 = vld [vmem:[%s1445 + $0x10] sm:$0xff]
        %v1449 = vld [vmem:[%s1445 + $0x18] sm:$0xff]
        %v1450 = vpack.c.bf16 %v1441, %v1441
        %1451 = vmatpush.bf16.msra.mxu0 %v879
        %1452 = vmatpush.bf16.msra.mxu0 %v875
        %1453 = vmatpush.bf16.msra.mxu0 %v871
        %1454 = vmatpush.bf16.msra.mxu0 %v867
        %1455 = vmatpush.bf16.msra.mxu0 %v863
        %1456 = vmatpush.bf16.msra.mxu0 %v859
        %1457 = vmatpush.bf16.msra.mxu0 %v855
        %1458 = vmatpush.bf16.msra.mxu0 %v851
        %1459 = vmatmul.bf16.gmra.mxu0 %v1450
        %v1460 = vpop.f32.mrf.mxu0
        %v1461 = vadd.f32 0.0, %v1460
        %v1462 = vpop.f32.mrf.mxu0
        %1463 = vdwg.mxu0
        %1464 = vmatpush.bf16.msra.mxu0 %v880
        %1465 = vmatpush.bf16.msra.mxu0 %v876
        %1466 = vmatpush.bf16.msra.mxu0 %v872
        %1467 = vmatpush.bf16.msra.mxu0 %v868
        %1468 = vmatpush.bf16.msra.mxu0 %v864
        %1469 = vmatpush.bf16.msra.mxu0 %v860
        %1470 = vmatpush.bf16.msra.mxu0 %v856
        %1471 = vmatpush.bf16.msra.mxu0 %v852
        %1472 = vmatmul.bf16.gmra.mxu0 %v1450
        %v1473 = vpop.f32.mrf.mxu0
        %v1474 = vadd.f32 0.0, %v1473
        %v1475 = vpop.f32.mrf.mxu0
        %1476 = vdwg.mxu0
        %1477 = vmatpush.bf16.msra.mxu0 %v881
        %1478 = vmatpush.bf16.msra.mxu0 %v877
        %1479 = vmatpush.bf16.msra.mxu0 %v873
        %1480 = vmatpush.bf16.msra.mxu0 %v869
        %1481 = vmatpush.bf16.msra.mxu0 %v865
        %1482 = vmatpush.bf16.msra.mxu0 %v861
        %1483 = vmatpush.bf16.msra.mxu0 %v857
        %1484 = vmatpush.bf16.msra.mxu0 %v853
        %1485 = vmatmul.bf16.gmra.mxu0 %v1450
        %v1486 = vpop.f32.mrf.mxu0
        %v1487 = vadd.f32 0.0, %v1486
        %v1488 = vpop.f32.mrf.mxu0
        %1489 = vdwg.mxu0
        %1490 = vmatpush.bf16.msra.mxu0 %v882
        %1491 = vmatpush.bf16.msra.mxu0 %v878
        %1492 = vmatpush.bf16.msra.mxu0 %v874
        %1493 = vmatpush.bf16.msra.mxu0 %v870
        %1494 = vmatpush.bf16.msra.mxu0 %v866
        %1495 = vmatpush.bf16.msra.mxu0 %v862
        %1496 = vmatpush.bf16.msra.mxu0 %v858
        %1497 = vmatpush.bf16.msra.mxu0 %v854
        %1498 = vmatmul.bf16.gmra.mxu0 %v1450
        %v1499 = vpop.f32.mrf.mxu0
        %v1500 = vadd.f32 0.0, %v1499
        %v1501 = vpop.f32.mrf.mxu0
        %1502 = vdwg.mxu0
        %v1503 = vadd.f32 %v1446, %v1461
        %v1504 = vadd.f32 %v1447, %v1474
        %v1505 = vadd.f32 %v1448, %v1487
        %v1506 = vadd.f32 %v1449, %v1500
        %v1507 = vxor.u32 %v1503, 2147483648
        %v1508 = vxor.u32 %v1504, 2147483648
        %v1509 = vxor.u32 %v1505, 2147483648
        %v1510 = vmul.f32 %v1507, 1.442695
        %v1511 = vpow.pop %v1510
        %v1512 = vmul.f32 %v1508, 1.442695
        %v1513 = vpow.pop %v1512
        %v1514 = vmul.f32 %v1509, 1.442695
        %v1515 = vpow.pop %v1514
        %v1516 = vadd.f32 %v1511, 1.0
        %v1517 = vadd.f32 %v1513, 1.0
        %v1518 = vadd.f32 %v1515, 1.0
        %v1519 = vrcp.pop %v1516
        %v1520 = vmul.f32 %v1516, %v1519
        %v1521 = vsub.f32 1.0, %v1520
        %v1522 = vmul.f32 %v1519, %v1521
        %v1523 = vadd.f32 %v1519, %v1522
        %vm1524 = vweird.f32 %v1516
        %vm1525 = vweird.f32 %v1519
        %vm1526 = vmor %vm1524, %vm1525
        %v1527 = vsel %vm1526, %v1519, %v1523
        %v1528 = vand.u32 2147483647, %v1516
        %vm1529 = vcmp.eq.f32.partialorder %v1528, 8.507059e+37
        %v1530 = vand.u32 %v1516, 2147483648
        %v1531 = vor.u32 1.1754944e-38, %v1530
        %v1532 = vsel %vm1529, %v1531, %v1527
        %v1533 = vmul.f32 1.0, %v1532
        %v1534 = vrcp.pop %v1517
        %v1535 = vmul.f32 %v1517, %v1534
        %v1536 = vsub.f32 1.0, %v1535
        %v1537 = vmul.f32 %v1534, %v1536
        %v1538 = vadd.f32 %v1534, %v1537
        %vm1539 = vweird.f32 %v1517
        %vm1540 = vweird.f32 %v1534
        %vm1541 = vmor %vm1539, %vm1540
        %v1542 = vsel %vm1541, %v1534, %v1538
        %v1543 = vand.u32 2147483647, %v1517
        %vm1544 = vcmp.eq.f32.partialorder %v1543, 8.507059e+37
        %v1545 = vand.u32 %v1517, 2147483648
        %v1546 = vor.u32 1.1754944e-38, %v1545
        %v1547 = vsel %vm1544, %v1546, %v1542
        %v1548 = vmul.f32 1.0, %v1547
        %v1549 = vrcp.pop %v1518
        %v1550 = vmul.f32 %v1518, %v1549
        %v1551 = vsub.f32 1.0, %v1550
        %v1552 = vmul.f32 %v1549, %v1551
        %v1553 = vadd.f32 %v1549, %v1552
        %vm1554 = vweird.f32 %v1518
        %vm1555 = vweird.f32 %v1549
        %vm1556 = vmor %vm1554, %vm1555
        %v1557 = vsel %vm1556, %v1549, %v1553
        %v1558 = vand.u32 2147483647, %v1518
        %vm1559 = vcmp.eq.f32.partialorder %v1558, 8.507059e+37
        %v1560 = vand.u32 %v1518, 2147483648
        %v1561 = vor.u32 1.1754944e-38, %v1560
        %v1562 = vsel %vm1559, %v1561, %v1557
        %v1563 = vmul.f32 1.0, %v1562
        %v1564 = vtanh.pop %v1506
        %v1565 = vmul.f32 %v1548, %v1442
        %v1566 = vmul.f32 %v1533, %v1564
        %v1567 = vadd.f32 %v1565, %v1566
        %v1568 = vtanh.pop %v1567
        %v1569 = vmul.f32 %v1563, %v1568
        %s1570 = sadd.s32 %s1034, 4
        %p1571 = scmp.lt.s32.totalorder %s1570, 20
        %s1572 = scalar_select %p1571, 1, 0
        %v1573 = vstv %s1572
        %vm1574 = vcmp.eq.s32.totalorder %v1573, 1
        %v1575 = vsel %vm1574, %v1569, %v1441
        %v1576 = vsel %vm1574, %v1567, %v1442
        %s1577 = smul.u32 5, 4
        %s1578 = smul.addr %s1577, 8
        %s1579 = scalar_lea.vmem [#allocation2], %s1578
        %v1580 = vld [vmem:[%s1579] sm:$0xff]
        %v1581 = vld [vmem:[%s1579 + $0x8] sm:$0xff]
        %v1582 = vld [vmem:[%s1579 + $0x10] sm:$0xff]
        %v1583 = vld [vmem:[%s1579 + $0x18] sm:$0xff]
        %v1584 = vpack.c.bf16 %v1575, %v1575
        %1585 = vmatpush.bf16.msra.mxu0 %v879
        %1586 = vmatpush.bf16.msra.mxu0 %v875
        %1587 = vmatpush.bf16.msra.mxu0 %v871
        %1588 = vmatpush.bf16.msra.mxu0 %v867
        %1589 = vmatpush.bf16.msra.mxu0 %v863
        %1590 = vmatpush.bf16.msra.mxu0 %v859
        %1591 = vmatpush.bf16.msra.mxu0 %v855
        %1592 = vmatpush.bf16.msra.mxu0 %v851
        %1593 = vmatmul.bf16.gmra.mxu0 %v1584
        %v1594 = vpop.f32.mrf.mxu0
        %v1595 = vadd.f32 0.0, %v1594
        %v1596 = vpop.f32.mrf.mxu0
        %1597 = vdwg.mxu0
        %1598 = vmatpush.bf16.msra.mxu0 %v880
        %1599 = vmatpush.bf16.msra.mxu0 %v876
        %1600 = vmatpush.bf16.msra.mxu0 %v872
        %1601 = vmatpush.bf16.msra.mxu0 %v868
        %1602 = vmatpush.bf16.msra.mxu0 %v864
        %1603 = vmatpush.bf16.msra.mxu0 %v860
        %1604 = vmatpush.bf16.msra.mxu0 %v856
        %1605 = vmatpush.bf16.msra.mxu0 %v852
        %1606 = vmatmul.bf16.gmra.mxu0 %v1584
        %v1607 = vpop.f32.mrf.mxu0
        %v1608 = vadd.f32 0.0, %v1607
        %v1609 = vpop.f32.mrf.mxu0
        %1610 = vdwg.mxu0
        %1611 = vmatpush.bf16.msra.mxu0 %v881
        %1612 = vmatpush.bf16.msra.mxu0 %v877
        %1613 = vmatpush.bf16.msra.mxu0 %v873
        %1614 = vmatpush.bf16.msra.mxu0 %v869
        %1615 = vmatpush.bf16.msra.mxu0 %v865
        %1616 = vmatpush.bf16.msra.mxu0 %v861
        %1617 = vmatpush.bf16.msra.mxu0 %v857
        %1618 = vmatpush.bf16.msra.mxu0 %v853
        %1619 = vmatmul.bf16.gmra.mxu0 %v1584
        %v1620 = vpop.f32.mrf.mxu0
        %v1621 = vadd.f32 0.0, %v1620
        %v1622 = vpop.f32.mrf.mxu0
        %1623 = vdwg.mxu0
        %1624 = vmatpush.bf16.msra.mxu0 %v882
        %1625 = vmatpush.bf16.msra.mxu0 %v878
        %1626 = vmatpush.bf16.msra.mxu0 %v874
        %1627 = vmatpush.bf16.msra.mxu0 %v870
        %1628 = vmatpush.bf16.msra.mxu0 %v866
        %1629 = vmatpush.bf16.msra.mxu0 %v862
        %1630 = vmatpush.bf16.msra.mxu0 %v858
        %1631 = vmatpush.bf16.msra.mxu0 %v854
        %1632 = vmatmul.bf16.gmra.mxu0 %v1584
        %v1633 = vpop.f32.mrf.mxu0
        %v1634 = vadd.f32 0.0, %v1633
        %v1635 = vpop.f32.mrf.mxu0
        %1636 = vdwg.mxu0
        %v1637 = vadd.f32 %v1580, %v1595
        %v1638 = vadd.f32 %v1581, %v1608
        %v1639 = vadd.f32 %v1582, %v1621
        %v1640 = vadd.f32 %v1583, %v1634
        %v1641 = vxor.u32 %v1637, 2147483648
        %v1642 = vxor.u32 %v1638, 2147483648
        %v1643 = vxor.u32 %v1639, 2147483648
        %v1644 = vmul.f32 %v1641, 1.442695
        %v1645 = vpow.pop %v1644
        %v1646 = vmul.f32 %v1642, 1.442695
        %v1647 = vpow.pop %v1646
        %v1648 = vmul.f32 %v1643, 1.442695
        %v1649 = vpow.pop %v1648
        %v1650 = vadd.f32 %v1645, 1.0
        %v1651 = vadd.f32 %v1647, 1.0
        %v1652 = vadd.f32 %v1649, 1.0
        %v1653 = vrcp.pop %v1650
        %v1654 = vmul.f32 %v1650, %v1653
        %v1655 = vsub.f32 1.0, %v1654
        %v1656 = vmul.f32 %v1653, %v1655
        %v1657 = vadd.f32 %v1653, %v1656
        %vm1658 = vweird.f32 %v1650
        %vm1659 = vweird.f32 %v1653
        %vm1660 = vmor %vm1658, %vm1659
        %v1661 = vsel %vm1660, %v1653, %v1657
        %v1662 = vand.u32 2147483647, %v1650
        %vm1663 = vcmp.eq.f32.partialorder %v1662, 8.507059e+37
        %v1664 = vand.u32 %v1650, 2147483648
        %v1665 = vor.u32 1.1754944e-38, %v1664
        %v1666 = vsel %vm1663, %v1665, %v1661
        %v1667 = vmul.f32 1.0, %v1666
        %v1668 = vrcp.pop %v1651
        %v1669 = vmul.f32 %v1651, %v1668
        %v1670 = vsub.f32 1.0, %v1669
        %v1671 = vmul.f32 %v1668, %v1670
        %v1672 = vadd.f32 %v1668, %v1671
        %vm1673 = vweird.f32 %v1651
        %vm1674 = vweird.f32 %v1668
        %vm1675 = vmor %vm1673, %vm1674
        %v1676 = vsel %vm1675, %v1668, %v1672
        %v1677 = vand.u32 2147483647, %v1651
        %vm1678 = vcmp.eq.f32.partialorder %v1677, 8.507059e+37
        %v1679 = vand.u32 %v1651, 2147483648
        %v1680 = vor.u32 1.1754944e-38, %v1679
        %v1681 = vsel %vm1678, %v1680, %v1676
        %v1682 = vmul.f32 1.0, %v1681
        %v1683 = vrcp.pop %v1652
        %v1684 = vmul.f32 %v1652, %v1683
        %v1685 = vsub.f32 1.0, %v1684
        %v1686 = vmul.f32 %v1683, %v1685
        %v1687 = vadd.f32 %v1683, %v1686
        %vm1688 = vweird.f32 %v1652
        %vm1689 = vweird.f32 %v1683
        %vm1690 = vmor %vm1688, %vm1689
        %v1691 = vsel %vm1690, %v1683, %v1687
        %v1692 = vand.u32 2147483647, %v1652
        %vm1693 = vcmp.eq.f32.partialorder %v1692, 8.507059e+37
        %v1694 = vand.u32 %v1652, 2147483648
        %v1695 = vor.u32 1.1754944e-38, %v1694
        %v1696 = vsel %vm1693, %v1695, %v1691
        %v1697 = vmul.f32 1.0, %v1696
        %v1698 = vtanh.pop %v1640
        %v1699 = vmul.f32 %v1682, %v1576
        %v1700 = vmul.f32 %v1667, %v1698
        %v1701 = vadd.f32 %v1699, %v1700
        %v1702 = vtanh.pop %v1701
        %v1703 = vmul.f32 %v1697, %v1702
        %s1704 = sadd.s32 %s1034, 5
        %p1705 = scmp.lt.s32.totalorder %s1704, 20
        %s1706 = scalar_select %p1705, 1, 0
        %v1707 = vstv %s1706
        %vm1708 = vcmp.eq.s32.totalorder %v1707, 1
        %v1709 = vsel %vm1708, %v1703, %v1575
        %v1710 = vsel %vm1708, %v1701, %v1576
        %s1711 = smul.u32 6, 4
        %s1712 = smul.addr %s1711, 8
        %s1713 = scalar_lea.vmem [#allocation2], %s1712
        %v1714 = vld [vmem:[%s1713] sm:$0xff]
        %v1715 = vld [vmem:[%s1713 + $0x8] sm:$0xff]
        %v1716 = vld [vmem:[%s1713 + $0x10] sm:$0xff]
        %v1717 = vld [vmem:[%s1713 + $0x18] sm:$0xff]
        %v1718 = vpack.c.bf16 %v1709, %v1709
        %1719 = vmatpush.bf16.msra.mxu0 %v879
        %1720 = vmatpush.bf16.msra.mxu0 %v875
        %1721 = vmatpush.bf16.msra.mxu0 %v871
        %1722 = vmatpush.bf16.msra.mxu0 %v867
        %1723 = vmatpush.bf16.msra.mxu0 %v863
        %1724 = vmatpush.bf16.msra.mxu0 %v859
        %1725 = vmatpush.bf16.msra.mxu0 %v855
        %1726 = vmatpush.bf16.msra.mxu0 %v851
        %1727 = vmatmul.bf16.gmra.mxu0 %v1718
        %v1728 = vpop.f32.mrf.mxu0
        %v1729 = vadd.f32 0.0, %v1728
        %v1730 = vpop.f32.mrf.mxu0
        %1731 = vdwg.mxu0
        %1732 = vmatpush.bf16.msra.mxu0 %v880
        %1733 = vmatpush.bf16.msra.mxu0 %v876
        %1734 = vmatpush.bf16.msra.mxu0 %v872
        %1735 = vmatpush.bf16.msra.mxu0 %v868
        %1736 = vmatpush.bf16.msra.mxu0 %v864
        %1737 = vmatpush.bf16.msra.mxu0 %v860
        %1738 = vmatpush.bf16.msra.mxu0 %v856
        %1739 = vmatpush.bf16.msra.mxu0 %v852
        %1740 = vmatmul.bf16.gmra.mxu0 %v1718
        %v1741 = vpop.f32.mrf.mxu0
        %v1742 = vadd.f32 0.0, %v1741
        %v1743 = vpop.f32.mrf.mxu0
        %1744 = vdwg.mxu0
        %1745 = vmatpush.bf16.msra.mxu0 %v881
        %1746 = vmatpush.bf16.msra.mxu0 %v877
        %1747 = vmatpush.bf16.msra.mxu0 %v873
        %1748 = vmatpush.bf16.msra.mxu0 %v869
        %1749 = vmatpush.bf16.msra.mxu0 %v865
        %1750 = vmatpush.bf16.msra.mxu0 %v861
        %1751 = vmatpush.bf16.msra.mxu0 %v857
        %1752 = vmatpush.bf16.msra.mxu0 %v853
        %1753 = vmatmul.bf16.gmra.mxu0 %v1718
        %v1754 = vpop.f32.mrf.mxu0
        %v1755 = vadd.f32 0.0, %v1754
        %v1756 = vpop.f32.mrf.mxu0
        %1757 = vdwg.mxu0
        %1758 = vmatpush.bf16.msra.mxu0 %v882
        %1759 = vmatpush.bf16.msra.mxu0 %v878
        %1760 = vmatpush.bf16.msra.mxu0 %v874
        %1761 = vmatpush.bf16.msra.mxu0 %v870
        %1762 = vmatpush.bf16.msra.mxu0 %v866
        %1763 = vmatpush.bf16.msra.mxu0 %v862
        %1764 = vmatpush.bf16.msra.mxu0 %v858
        %1765 = vmatpush.bf16.msra.mxu0 %v854
        %1766 = vmatmul.bf16.gmra.mxu0 %v1718
        %v1767 = vpop.f32.mrf.mxu0
        %v1768 = vadd.f32 0.0, %v1767
        %v1769 = vpop.f32.mrf.mxu0
        %1770 = vdwg.mxu0
        %v1771 = vadd.f32 %v1714, %v1729
        %v1772 = vadd.f32 %v1715, %v1742
        %v1773 = vadd.f32 %v1716, %v1755
        %v1774 = vadd.f32 %v1717, %v1768
        %v1775 = vxor.u32 %v1771, 2147483648
        %v1776 = vxor.u32 %v1772, 2147483648
        %v1777 = vxor.u32 %v1773, 2147483648
        %v1778 = vmul.f32 %v1775, 1.442695
        %v1779 = vpow.pop %v1778
        %v1780 = vmul.f32 %v1776, 1.442695
        %v1781 = vpow.pop %v1780
        %v1782 = vmul.f32 %v1777, 1.442695
        %v1783 = vpow.pop %v1782
        %v1784 = vadd.f32 %v1779, 1.0
        %v1785 = vadd.f32 %v1781, 1.0
        %v1786 = vadd.f32 %v1783, 1.0
        %v1787 = vrcp.pop %v1784
        %v1788 = vmul.f32 %v1784, %v1787
        %v1789 = vsub.f32 1.0, %v1788
        %v1790 = vmul.f32 %v1787, %v1789
        %v1791 = vadd.f32 %v1787, %v1790
        %vm1792 = vweird.f32 %v1784
        %vm1793 = vweird.f32 %v1787
        %vm1794 = vmor %vm1792, %vm1793
        %v1795 = vsel %vm1794, %v1787, %v1791
        %v1796 = vand.u32 2147483647, %v1784
        %vm1797 = vcmp.eq.f32.partialorder %v1796, 8.507059e+37
        %v1798 = vand.u32 %v1784, 2147483648
        %v1799 = vor.u32 1.1754944e-38, %v1798
        %v1800 = vsel %vm1797, %v1799, %v1795
        %v1801 = vmul.f32 1.0, %v1800
        %v1802 = vrcp.pop %v1785
        %v1803 = vmul.f32 %v1785, %v1802
        %v1804 = vsub.f32 1.0, %v1803
        %v1805 = vmul.f32 %v1802, %v1804
        %v1806 = vadd.f32 %v1802, %v1805
        %vm1807 = vweird.f32 %v1785
        %vm1808 = vweird.f32 %v1802
        %vm1809 = vmor %vm1807, %vm1808
        %v1810 = vsel %vm1809, %v1802, %v1806
        %v1811 = vand.u32 2147483647, %v1785
        %vm1812 = vcmp.eq.f32.partialorder %v1811, 8.507059e+37
        %v1813 = vand.u32 %v1785, 2147483648
        %v1814 = vor.u32 1.1754944e-38, %v1813
        %v1815 = vsel %vm1812, %v1814, %v1810
        %v1816 = vmul.f32 1.0, %v1815
        %v1817 = vrcp.pop %v1786
        %v1818 = vmul.f32 %v1786, %v1817
        %v1819 = vsub.f32 1.0, %v1818
        %v1820 = vmul.f32 %v1817, %v1819
        %v1821 = vadd.f32 %v1817, %v1820
        %vm1822 = vweird.f32 %v1786
        %vm1823 = vweird.f32 %v1817
        %vm1824 = vmor %vm1822, %vm1823
        %v1825 = vsel %vm1824, %v1817, %v1821
        %v1826 = vand.u32 2147483647, %v1786
        %vm1827 = vcmp.eq.f32.partialorder %v1826, 8.507059e+37
        %v1828 = vand.u32 %v1786, 2147483648
        %v1829 = vor.u32 1.1754944e-38, %v1828
        %v1830 = vsel %vm1827, %v1829, %v1825
        %v1831 = vmul.f32 1.0, %v1830
        %v1832 = vtanh.pop %v1774
        %v1833 = vmul.f32 %v1816, %v1710
        %v1834 = vmul.f32 %v1801, %v1832
        %v1835 = vadd.f32 %v1833, %v1834
        %v1836 = vtanh.pop %v1835
        %v1837 = vmul.f32 %v1831, %v1836
        %s1838 = sadd.s32 %s1034, 6
        %p1839 = scmp.lt.s32.totalorder %s1838, 20
        %s1840 = scalar_select %p1839, 1, 0
        %v1841 = vstv %s1840
        %vm1842 = vcmp.eq.s32.totalorder %v1841, 1
        %v1843 = vsel %vm1842, %v1837, %v1709
        %v1844 = vsel %vm1842, %v1835, %v1710
        %s1845 = smul.u32 7, 4
        %s1846 = smul.addr %s1845, 8
        %s1847 = scalar_lea.vmem [#allocation2], %s1846
        %v1848 = vld [vmem:[%s1847] sm:$0xff]
        %v1849 = vld [vmem:[%s1847 + $0x8] sm:$0xff]
        %v1850 = vld [vmem:[%s1847 + $0x10] sm:$0xff]
        %v1851 = vld [vmem:[%s1847 + $0x18] sm:$0xff]
        %v1852 = vpack.c.bf16 %v1843, %v1843
        %1853 = vmatpush.bf16.msra.mxu0 %v879
        %1854 = vmatpush.bf16.msra.mxu0 %v875
        %1855 = vmatpush.bf16.msra.mxu0 %v871
        %1856 = vmatpush.bf16.msra.mxu0 %v867
        %1857 = vmatpush.bf16.msra.mxu0 %v863
        %1858 = vmatpush.bf16.msra.mxu0 %v859
        %1859 = vmatpush.bf16.msra.mxu0 %v855
        %1860 = vmatpush.bf16.msra.mxu0 %v851
        %1861 = vmatmul.bf16.gmra.mxu0 %v1852
        %v1862 = vpop.f32.mrf.mxu0
        %v1863 = vadd.f32 0.0, %v1862
        %v1864 = vpop.f32.mrf.mxu0
        %1865 = vdwg.mxu0
        %1866 = vmatpush.bf16.msra.mxu0 %v880
        %1867 = vmatpush.bf16.msra.mxu0 %v876
        %1868 = vmatpush.bf16.msra.mxu0 %v872
        %1869 = vmatpush.bf16.msra.mxu0 %v868
        %1870 = vmatpush.bf16.msra.mxu0 %v864
        %1871 = vmatpush.bf16.msra.mxu0 %v860
        %1872 = vmatpush.bf16.msra.mxu0 %v856
        %1873 = vmatpush.bf16.msra.mxu0 %v852
        %1874 = vmatmul.bf16.gmra.mxu0 %v1852
        %v1875 = vpop.f32.mrf.mxu0
        %v1876 = vadd.f32 0.0, %v1875
        %v1877 = vpop.f32.mrf.mxu0
        %1878 = vdwg.mxu0
        %1879 = vmatpush.bf16.msra.mxu0 %v881
        %1880 = vmatpush.bf16.msra.mxu0 %v877
        %1881 = vmatpush.bf16.msra.mxu0 %v873
        %1882 = vmatpush.bf16.msra.mxu0 %v869
        %1883 = vmatpush.bf16.msra.mxu0 %v865
        %1884 = vmatpush.bf16.msra.mxu0 %v861
        %1885 = vmatpush.bf16.msra.mxu0 %v857
        %1886 = vmatpush.bf16.msra.mxu0 %v853
        %1887 = vmatmul.bf16.gmra.mxu0 %v1852
        %v1888 = vpop.f32.mrf.mxu0
        %v1889 = vadd.f32 0.0, %v1888
        %v1890 = vpop.f32.mrf.mxu0
        %1891 = vdwg.mxu0
        %1892 = vmatpush.bf16.msra.mxu0 %v882
        %1893 = vmatpush.bf16.msra.mxu0 %v878
        %1894 = vmatpush.bf16.msra.mxu0 %v874
        %1895 = vmatpush.bf16.msra.mxu0 %v870
        %1896 = vmatpush.bf16.msra.mxu0 %v866
        %1897 = vmatpush.bf16.msra.mxu0 %v862
        %1898 = vmatpush.bf16.msra.mxu0 %v858
        %1899 = vmatpush.bf16.msra.mxu0 %v854
        %1900 = vmatmul.bf16.gmra.mxu0 %v1852
        %v1901 = vpop.f32.mrf.mxu0
        %v1902 = vadd.f32 0.0, %v1901
        %v1903 = vpop.f32.mrf.mxu0
        %1904 = vdwg.mxu0
        %v1905 = vadd.f32 %v1848, %v1863
        %v1906 = vadd.f32 %v1849, %v1876
        %v1907 = vadd.f32 %v1850, %v1889
        %v1908 = vadd.f32 %v1851, %v1902
        %v1909 = vxor.u32 %v1905, 2147483648
        %v1910 = vxor.u32 %v1906, 2147483648
        %v1911 = vxor.u32 %v1907, 2147483648
        %v1912 = vmul.f32 %v1909, 1.442695
        %v1913 = vpow.pop %v1912
        %v1914 = vmul.f32 %v1910, 1.442695
        %v1915 = vpow.pop %v1914
        %v1916 = vmul.f32 %v1911, 1.442695
        %v1917 = vpow.pop %v1916
        %v1918 = vadd.f32 %v1913, 1.0
        %v1919 = vadd.f32 %v1915, 1.0
        %v1920 = vadd.f32 %v1917, 1.0
        %v1921 = vrcp.pop %v1918
        %v1922 = vmul.f32 %v1918, %v1921
        %v1923 = vsub.f32 1.0, %v1922
        %v1924 = vmul.f32 %v1921, %v1923
        %v1925 = vadd.f32 %v1921, %v1924
        %vm1926 = vweird.f32 %v1918
        %vm1927 = vweird.f32 %v1921
        %vm1928 = vmor %vm1926, %vm1927
        %v1929 = vsel %vm1928, %v1921, %v1925
        %v1930 = vand.u32 2147483647, %v1918
        %vm1931 = vcmp.eq.f32.partialorder %v1930, 8.507059e+37
        %v1932 = vand.u32 %v1918, 2147483648
        %v1933 = vor.u32 1.1754944e-38, %v1932
        %v1934 = vsel %vm1931, %v1933, %v1929
        %v1935 = vmul.f32 1.0, %v1934
        %v1936 = vrcp.pop %v1919
        %v1937 = vmul.f32 %v1919, %v1936
        %v1938 = vsub.f32 1.0, %v1937
        %v1939 = vmul.f32 %v1936, %v1938
        %v1940 = vadd.f32 %v1936, %v1939
        %vm1941 = vweird.f32 %v1919
        %vm1942 = vweird.f32 %v1936
        %vm1943 = vmor %vm1941, %vm1942
        %v1944 = vsel %vm1943, %v1936, %v1940
        %v1945 = vand.u32 2147483647, %v1919
        %vm1946 = vcmp.eq.f32.partialorder %v1945, 8.507059e+37
        %v1947 = vand.u32 %v1919, 2147483648
        %v1948 = vor.u32 1.1754944e-38, %v1947
        %v1949 = vsel %vm1946, %v1948, %v1944
        %v1950 = vmul.f32 1.0, %v1949
        %v1951 = vrcp.pop %v1920
        %v1952 = vmul.f32 %v1920, %v1951
        %v1953 = vsub.f32 1.0, %v1952
        %v1954 = vmul.f32 %v1951, %v1953
        %v1955 = vadd.f32 %v1951, %v1954
        %vm1956 = vweird.f32 %v1920
        %vm1957 = vweird.f32 %v1951
        %vm1958 = vmor %vm1956, %vm1957
        %v1959 = vsel %vm1958, %v1951, %v1955
        %v1960 = vand.u32 2147483647, %v1920
        %vm1961 = vcmp.eq.f32.partialorder %v1960, 8.507059e+37
        %v1962 = vand.u32 %v1920, 2147483648
        %v1963 = vor.u32 1.1754944e-38, %v1962
        %v1964 = vsel %vm1961, %v1963, %v1959
        %v1965 = vmul.f32 1.0, %v1964
        %v1966 = vtanh.pop %v1908
        %v1967 = vmul.f32 %v1950, %v1844
        %v1968 = vmul.f32 %v1935, %v1966
        %v1969 = vadd.f32 %v1967, %v1968
        %v1970 = vtanh.pop %v1969
        %v1971 = vmul.f32 %v1965, %v1970
        %s1972 = sadd.s32 %s1034, 7
        %p1973 = scmp.lt.s32.totalorder %s1972, 20
        %s1974 = scalar_select %p1973, 1, 0
        %v1975 = vstv %s1974
        %vm1976 = vcmp.eq.s32.totalorder %v1975, 1
        %v1977 = vsel %vm1976, %v1971, %v1843
        %v1978 = vsel %vm1976, %v1969, %v1844
        %1979 = vst [vmem:[#allocation3] sm:$0xff] %v1977
        %1980 = vst [vmem:[#allocation4] sm:$0xff] %v1978
        %p1981 = scmp.eq.s32.totalorder %s23, 2
        // Predicated region
        $region69: #{tpu_custom_call.1} parent=43 // pred_check
          %p1982 = pneg %p1981
        $region70: #{tpu_custom_call.1} parent=43 // pred_check_branch
          %1984 = sbr.rel (%p1982) target = $region72
        $region71: #{tpu_custom_call.1} parent=43 // pred_region
          %v1985 = vpack.c.bf16 %v1977, %v1977
          %v1986 = vld [vmem:[#allocation13] sm:$0xf]
          %v1987 = vld [vmem:[#allocation13 + $0x4] sm:$0xf]
          %v1988 = vld [vmem:[#allocation13 + $0x8] sm:$0xf]
          %v1989 = vld [vmem:[#allocation13 + $0xc] sm:$0xf]
          %v1990 = vld [vmem:[#allocation13 + $0x10] sm:$0xf]
          %v1991 = vld [vmem:[#allocation13 + $0x14] sm:$0xf]
          %v1992 = vld [vmem:[#allocation13 + $0x18] sm:$0xf]
          %v1993 = vld [vmem:[#allocation13 + $0x1c] sm:$0xf]
          %v1994 = vld [vmem:[#allocation13 + $0x20] sm:$0xf]
          %v1995 = vld [vmem:[#allocation13 + $0x24] sm:$0xf]
          %v1996 = vld [vmem:[#allocation13 + $0x28] sm:$0xf]
          %v1997 = vld [vmem:[#allocation13 + $0x2c] sm:$0xf]
          %v1998 = vld [vmem:[#allocation13 + $0x30] sm:$0xf]
          %v1999 = vld [vmem:[#allocation13 + $0x34] sm:$0xf]
          %v2000 = vld [vmem:[#allocation13 + $0x38] sm:$0xf]
          %v2001 = vld [vmem:[#allocation13 + $0x3c] sm:$0xf]
          %v2002 = vld [vmem:[%s5] sm:$0x1]
          %v2004 = vperm.slane %v2002, 0
          %v2022 = vunpack.c.l.b16 %v1986
          %v2023 = vunpack.c.l.b16 %v1987
          %v2024 = vunpack.c.l.b16 %v1988
          %v2025 = vunpack.c.l.b16 %v1989
          %v2026 = vunpack.c.l.b16 %v1990
          %v2027 = vunpack.c.l.b16 %v1991
          %v2028 = vunpack.c.l.b16 %v1992
          %v2029 = vunpack.c.l.b16 %v1993
          %v2030 = vunpack.c.l.b16 %v1994
          %v2031 = vunpack.c.l.b16 %v1995
          %v2032 = vunpack.c.l.b16 %v1996
          %v2033 = vunpack.c.l.b16 %v1997
          %v2034 = vunpack.c.l.b16 %v1998
          %v2035 = vunpack.c.l.b16 %v1999
          %v2036 = vunpack.c.l.b16 %v2000
          %v2037 = vunpack.c.l.b16 %v2001
          %v2038 = vpack.c.b16 %v2023, %v2022
          %v2039 = vpack.c.b16 %v2025, %v2024
          %v2040 = vpack.c.b16 %v2027, %v2026
          %v2041 = vpack.c.b16 %v2029, %v2028
          %v2042 = vpack.c.b16 %v2031, %v2030
          %v2043 = vpack.c.b16 %v2033, %v2032
          %v2044 = vpack.c.b16 %v2035, %v2034
          %v2045 = vpack.c.b16 %v2037, %v2036
          %2054 = vmatpush.bf16.msra.mxu0 %v2045
          %2055 = vmatpush.bf16.msra.mxu0 %v2044
          %2056 = vmatpush.bf16.msra.mxu0 %v2043
          %2057 = vmatpush.bf16.msra.mxu0 %v2042
          %2058 = vmatpush.bf16.msra.mxu0 %v2041
          %2059 = vmatpush.bf16.msra.mxu0 %v2040
          %2060 = vmatpush.bf16.msra.mxu0 %v2039
          %2061 = vmatpush.bf16.msra.mxu0 %v2038
          %2062 = vmatmul.bf16.gmra.mxu0 %v1985
          %v2063 = vpop.f32.mrf.mxu0
          %v2064 = vadd.f32 %v2004, %v2063
          %v2065 = vpop.f32.mrf.mxu0
          %2066 = vdwg.mxu0
          %v2067 = vmax.f32 %v2064, 0.0
          %2068 = vst [vmem:[#allocation14] sm:$0xff] %v2067
        $region72: #{tpu_custom_call.1} parent=43 // pred_fallthru
          _
        // Predicated region
        $region73: #{tpu_custom_call.1} parent=43 // pred_check
          %p2069 = pneg %p167
        $region74: #{tpu_custom_call.1} parent=43 // pred_check_branch
          %2071 = sbr.rel (%p2069) target = $region76
        $region75: #{tpu_custom_call.1} parent=43 // pred_region
          %2073 = vsyncadd [#allocation7], 0
          %s2075 = sshll.u32 [#allocation14], 4
          %s2076 = int_to_ptr.vmem [resolvable:$true] %s2075
          %s2077 = sshll.u32 %s6, 4
          %s2078 = int_to_ptr.hbm [resolvable:$true] %s2077
          %2080 = dma.vmem_to_hbm [thread:$0]  %s2076, 128, %s2078, [#allocation7]
        $region76: #{tpu_custom_call.1} parent=43 // pred_fallthru
          _
        // Predicated region
        $region77: #{tpu_custom_call.1} parent=43 // pred_check
          %p2081 = pneg %p167
        $region78: #{tpu_custom_call.1} parent=43 // pred_check_branch
          %2083 = sbr.rel (%p2081) target = $region80
        $region79: #{tpu_custom_call.1} parent=43 // pred_region
          %2085 = dma.done [#allocation7], 128
        $region80: #{tpu_custom_call.1} parent=43 // pred_fallthru
          _
      $region44: #{tpu_custom_call.1} parent=5 // pred_fallthru
        _
      %p2086 = scmp.le.s32.totalorder 2, %s18
      // Predicated region
      $region81: #{tpu_custom_call.1} parent=5 // pred_check
        %p2087 = pneg %p2086
      $region82: #{tpu_custom_call.1} parent=5 // pred_check_branch
        %2089 = sbr.rel (%p2087) target = $region84
      $region83: #{tpu_custom_call.1} parent=5 // pred_region
        %s2090 = ssub.s32 %s18, 2
      $region84: #{tpu_custom_call.1} parent=5 // pred_fallthru
        _
    $region6: #{tpu_custom_call.1} parent=1 // loop_footer
      %s22 = sadd.s32 1, %s18
    $region7: #{tpu_custom_call.1} parent=1 // loop_footer_branch
      %17 = sbr.rel target = $region3
    $region8: #{tpu_custom_call.1} parent=1 // loop_exit
      _
    %2091 = vsyncpa [#allocation6], 1
    %s2092 = scalar_lea.sflag [#allocation6], 1
    %2093 = vsyncpa %s2092, 1
    %2094 = vsyncpa [#allocation9], 1
    %2095 = vsyncpa [#allocation12], 1
    %2096 = vsyncpa [#allocation7], 1
    %s2097 = scalar_lea.sflag [#allocation7], 1
    %2098 = vsyncpa %s2097, 1

</llo_original>
